<compile_context>
chip_gen: v5e
topology: v5e:2x2
jax: 0.10.0
libtpu: 0.0.40
codegen_flags: <defaults>
</compile_context>

<pallas_src>
import jax
import jax.numpy as jnp
from jax.experimental import pallas as pl
from jax.experimental.pallas import tpu as pltpu


# ------------------------------ slab layout ------------------------------
def _rup8(n):
    return (n + 7) // 8 * 8


def make_layout(num_features, hidden_dim, heads):
    F, H = num_features, hidden_dim
    D2 = heads * H          # GAT output width / LSTM input width
    G4 = 4 * H              # LSTM gate width
    lanes = max(128, G4)
    off = {}
    row = 0

    def add(name, rows):
        nonlocal row
        off[name] = row
        row += _rup8(rows)

    add("w1", F)      # [F, D2]
    add("A1", D2)     # [D2, 2*heads]  block-diag attention matrix, layer 1
    add("b1", 1)      # [1, D2]
    add("w2", D2)     # [D2, D2]
    add("A2", D2)     # [D2, 2*heads]
    add("b2", 1)      # [1, D2]
    add("wih", D2)    # [D2, 4H]
    add("whh", H)     # [H, 4H]
    add("bl", 1)      # [1, 4H]
    add("fc", 2)      # row 0: fcw as [1,H]; row 1: fcb at lane 0
    off["total"] = row
    return off, lanes


def build_att_matrix(a_src, a_dst):
    """Block-diagonal [heads*d, 2*heads]: cols [0:heads] src terms, [heads:2h] dst terms."""
    heads, d = a_src.shape
    A = jnp.zeros((heads * d, 2 * heads), jnp.float32)
    for h in range(heads):
        A = A.at[h * d:(h + 1) * d, h].set(a_src[h])
        A = A.at[h * d:(h + 1) * d, heads + h].set(a_dst[h])
    return A


def pack_params(params, num_features, hidden_dim, heads):
    """One-time packing of all parameters into a single lane-dense f32 slab."""
    F, H = num_features, hidden_dim
    D2, G4 = heads * H, 4 * H
    off, lanes = make_layout(num_features, hidden_dim, heads)
    A1 = build_att_matrix(params["a_src1"], params["a_dst1"])
    A2 = build_att_matrix(params["a_src2"], params["a_dst2"])
    s = jnp.zeros((off["total"], lanes), jnp.float32)
    s = s.at[off["w1"]:off["w1"] + F, :D2].set(params["w1"])
    s = s.at[off["A1"]:off["A1"] + D2, :2 * heads].set(A1)
    s = s.at[off["b1"]:off["b1"] + 1, :D2].set(params["b1"])
    s = s.at[off["w2"]:off["w2"] + D2, :D2].set(params["w2"])
    s = s.at[off["A2"]:off["A2"] + D2, :2 * heads].set(A2)
    s = s.at[off["b2"]:off["b2"] + 1, :D2].set(params["b2"])
    s = s.at[off["wih"]:off["wih"] + D2, :G4].set(params["wih_t"])
    s = s.at[off["whh"]:off["whh"] + H, :G4].set(params["whh_t"])
    s = s.at[off["bl"]:off["bl"] + 1, :G4].set(params["b_lstm"])
    s = s.at[off["fc"]:off["fc"] + 1, :H].set(params["fcw"].reshape(1, H))
    s = s.at[off["fc"] + 1:off["fc"] + 2, 0:1].set(params["fcb"])
    return s


# ----------------------------- fused model kernel -----------------------------
def make_fused_kernel(num_features, hidden_dim, heads, n_nodes,
                      att_slope=0.2, out_slope=0.01):
    F, H = num_features, hidden_dim
    D2, G4 = heads * H, 4 * H
    N = n_nodes
    off, _ = make_layout(num_features, hidden_dim, heads)
    bf16 = jnp.bfloat16

    def leaky(v, slope):
        return jnp.where(v > 0, v, slope * v)

    def kernel(x_ref, adj_ref, slab_ref, out_ref):
        # Additive edge mask built once (0 on edges, -1e30 elsewhere); shared by both layers.
        mask_add = (adj_ref[...] - 1.0) * 1e30                            # [N, N]

        def gat(x_in, w, A, bias):
            # One projection for all heads (bf16 operands, f32 accumulate).
            wh = jnp.dot(x_in.astype(bf16), w.astype(bf16),
                         preferred_element_type=jnp.float32)              # [N, D2]
            # All attention dot-products in one MXU matmul instead of XLU reductions.
            scores = jnp.dot(wh.astype(bf16), A.astype(bf16),
                             preferred_element_type=jnp.float32)          # [N, 2*heads]
            scores_t = scores.T                                           # [2*heads, N]
            # Append a ones block so the softmax denominator falls out of the
            # aggregation matmul (D2-wide keeps the concat tile-aligned; at D2=64
            # wh_ext is exactly one 128-lane MXU tile, extra columns are free).
            wh_ext = jnp.concatenate(
                [wh, jnp.ones((N, D2), jnp.float32)], axis=-1).astype(bf16)
            outs = []
            for hd in range(heads):
                e = scores[:, heads + hd:heads + hd + 1] + scores_t[hd:hd + 1, :]
                e = leaky(e, att_slope) + mask_add                         # mask non-edges
                e = e - jnp.max(e, axis=-1, keepdims=True)                 # stable softmax
                p = jnp.exp(e)                                             # unnormalized
                agg = jnp.dot(p.astype(bf16), wh_ext,
                              preferred_element_type=jnp.float32)          # [N, 2*D2]
                inv = pl.reciprocal(agg[:, D2:D2 + 1], approx=True)        # 1/row-sum
                outs.append(agg[:, hd * H:(hd + 1) * H] * inv)
            out = jnp.concatenate(outs, axis=-1) + bias                    # [N, D2]
            return leaky(out, out_slope)                                   # module leaky_relu

        # Static, 8-row-aligned slab windows (single DMA'd parameter slab).
        w1 = slab_ref[off["w1"]:off["w1"] + F, :D2]
        A1 = slab_ref[off["A1"]:off["A1"] + D2, :2 * heads]
        b1 = slab_ref[off["b1"]:off["b1"] + 1, :D2]
        w2 = slab_ref[off["w2"]:off["w2"] + D2, :D2]
        A2 = slab_ref[off["A2"]:off["A2"] + D2, :2 * heads]
        b2 = slab_ref[off["b2"]:off["b2"] + 1, :D2]

        h1 = gat(x_ref[...], w1, A1, b1)
        h2 = gat(h1, w2, A2, b2)

        # ---- LSTM over the node sequence (batch of 1 after unsqueeze(0)) ----
        wih = slab_ref[off["wih"]:off["wih"] + D2, :G4]                    # [D2, 4H]
        whh = slab_ref[off["whh"]:off["whh"] + H, :G4]                     # [H, 4H]
        bl = slab_ref[off["bl"]:off["bl"] + 1, :G4]                        # [1, 4H]

        # Hoisted input projection: one lane-dense [N, 4H] bf16 matmul + combined bias.
        gates_x = jnp.dot(h2.astype(bf16), wih.astype(bf16),
                          preferred_element_type=jnp.float32) + bl         # [N, 4H]

        # TODO(synk): keep whh resident in MXU weight regs via pltpu.matmul_push_rhs
        # and accumulate per step with matmul_acc_lhs/matmul_pop (MRB on v7x).
        h = jnp.zeros((1, H), jnp.float32)
        c = jnp.zeros((1, H), jnp.float32)
        for t in range(N):  # static full unroll; recurrence matmul kept f32 for fidelity
            gates = gates_x[t:t + 1, :] + jnp.dot(
                h, whh, preferred_element_type=jnp.float32)                # [1, 4H]
            sig = jax.nn.sigmoid(gates)          # one EUP pass on the full gate vector
            i_g = sig[:, 0:H]
            f_g = sig[:, H:2 * H]
            o_g = sig[:, 3 * H:4 * H]
            g_g = jnp.tanh(gates[:, 2 * H:3 * H])
            c = f_g * c + i_g * g_g
            h = o_g * jnp.tanh(c)

        # ---- FC on last hidden state: VPU multiply + lane-sum (no tail MXU push) ----
        fcw = slab_ref[off["fc"]:off["fc"] + 1, :H]                        # [1, H]
        fcb = slab_ref[off["fc"] + 1:off["fc"] + 2, 0:1]                   # [1, 1]
        out_ref[...] = jnp.sum(h * fcw, axis=-1, keepdims=True) + fcb

    return kernel


# ------------------------------ full forward ------------------------------
def advanced_gnn_forward(x, adj, slab, num_features, hidden_dim, heads):
    n = x.shape[0]
    kernel = make_fused_kernel(num_features, hidden_dim, heads, n)
    out = pl.pallas_call(
        kernel,
        out_shape=jax.ShapeDtypeStruct((1, 1), jnp.float32),
        # No grid: single invocation, whole arrays in VMEM, no double-buffering.
        in_specs=[pl.BlockSpec(memory_space=pltpu.MemorySpace.VMEM)] * 3,
        out_specs=pl.BlockSpec(memory_space=pltpu.MemorySpace.VMEM),
    )(x, adj, slab)
    return out.reshape(())   # matches out.squeeze() -> scalar


if __name__ == "__main__":
    num_features, hidden_dim, num_heads = 4, 32, 2
    n_nodes = 8
    in2 = hidden_dim * num_heads      # 64
    lstm_in = hidden_dim * num_heads  # 64

    key = jax.random.PRNGKey(0)
    ks = jax.random.split(key, 16)
    scale = 0.1

    # node features
    x = jax.random.normal(ks[0], (n_nodes, num_features), jnp.float32)

    # deterministic ring graph edge_index [2, E] (src row, dst row)
    src = jnp.arange(n_nodes)
    dst = (src + 1) % n_nodes
    edge_index = jnp.stack([jnp.concatenate([src, dst]),
                            jnp.concatenate([dst, src])])
    # dense adjacency with self loops: adj[dst, src] = 1
    adj = jnp.zeros((n_nodes, n_nodes), jnp.float32)
    adj = adj.at[edge_index[1], edge_index[0]].set(1.0)
    adj = jnp.minimum(adj + jnp.eye(n_nodes, dtype=jnp.float32), 1.0)

    params = {
        # GATConv 1: in=num_features, out=hidden_dim, heads
        "w1": scale * jax.random.normal(ks[1], (num_features, num_heads * hidden_dim), jnp.float32),
        "a_src1": scale * jax.random.normal(ks[2], (num_heads, hidden_dim), jnp.float32),
        "a_dst1": scale * jax.random.normal(ks[3], (num_heads, hidden_dim), jnp.float32),
        "b1": scale * jax.random.normal(ks[4], (1, num_heads * hidden_dim), jnp.float32),
        # GATConv 2: in=hidden_dim*heads, out=hidden_dim, heads
        "w2": scale * jax.random.normal(ks[5], (in2, num_heads * hidden_dim), jnp.float32),
        "a_src2": scale * jax.random.normal(ks[6], (num_heads, hidden_dim), jnp.float32),
        "a_dst2": scale * jax.random.normal(ks[7], (num_heads, hidden_dim), jnp.float32),
        "b2": scale * jax.random.normal(ks[8], (1, num_heads * hidden_dim), jnp.float32),
        # LSTM: input=hidden_dim*heads, hidden=hidden_dim, gate order i,f,g,o
        # b_lstm is the combined bias (bias_ih + bias_hh of PyTorch LSTM).
        "wih_t": scale * jax.random.normal(ks[9], (lstm_in, 4 * hidden_dim), jnp.float32),
        "whh_t": scale * jax.random.normal(ks[10], (hidden_dim, 4 * hidden_dim), jnp.float32),
        "b_lstm": scale * jax.random.normal(ks[11], (1, 4 * hidden_dim), jnp.float32),
        # fc: hidden_dim -> 1
        "fcw": scale * jax.random.normal(ks[12], (hidden_dim, 1), jnp.float32),
        "fcb": scale * jax.random.normal(ks[13], (1, 1), jnp.float32),
    }

    # One-time parameter packing into a single lane-dense slab (1 DMA at kernel time).
    slab = pack_params(params, num_features, hidden_dim, num_heads)

    out = advanced_gnn_forward(x, adj, slab, num_features, hidden_dim, num_heads)
    jax.block_until_ready(out)
    assert out.shape == ()
    print("KERNEL_OK")
</pallas_src>

<mosaic_0001>
module attributes {stable_mosaic.version = 11 : i64} {
  func.func @kernel(%arg0: memref<8x4xf32, #tpu.memory_space<vmem>>, %arg1: memref<8x8xf32, #tpu.memory_space<vmem>>, %arg2: memref<328x128xf32, #tpu.memory_space<vmem>>, %arg3: memref<1x1xf32, #tpu.memory_space<vmem>>) attributes {dimension_semantics = [], scalar_prefetch = 0 : i64, scratch_operands = 0 : i64, tpu.core_type = #tpu.core_type<tc>} {
    %c0 = arith.constant 0 : index
    %c0_0 = arith.constant 0 : index
    %0 = vector.load %arg1[%c0, %c0_0] : memref<8x8xf32, #tpu.memory_space<vmem>>, vector<8x8xf32>
    %cst = arith.constant 1.000000e+00 : f32
    %1 = vector.broadcast %cst : f32 to vector<8x8xf32>
    %2 = arith.subf %0, %1 : vector<8x8xf32>
    %cst_1 = arith.constant 1.000000e+30 : f32
    %3 = vector.broadcast %cst_1 : f32 to vector<8x8xf32>
    %4 = arith.mulf %2, %3 : vector<8x8xf32>
    %c0_2 = arith.constant 0 : index
    %c0_3 = arith.constant 0 : index
    %5 = vector.load %arg2[%c0_2, %c0_3] : memref<328x128xf32, #tpu.memory_space<vmem>>, vector<4x64xf32>
    %c8 = arith.constant 8 : index
    %c0_4 = arith.constant 0 : index
    %6 = vector.load %arg2[%c8, %c0_4] : memref<328x128xf32, #tpu.memory_space<vmem>>, vector<64x4xf32>
    %c72 = arith.constant 72 : index
    %c0_5 = arith.constant 0 : index
    %7 = vector.load %arg2[%c72, %c0_5] : memref<328x128xf32, #tpu.memory_space<vmem>>, vector<1x64xf32>
    %c80 = arith.constant 80 : index
    %c0_6 = arith.constant 0 : index
    %8 = vector.load %arg2[%c80, %c0_6] : memref<328x128xf32, #tpu.memory_space<vmem>>, vector<64x64xf32>
    %c144 = arith.constant 144 : index
    %c0_7 = arith.constant 0 : index
    %9 = vector.load %arg2[%c144, %c0_7] : memref<328x128xf32, #tpu.memory_space<vmem>>, vector<64x4xf32>
    %c208 = arith.constant 208 : index
    %c0_8 = arith.constant 0 : index
    %10 = vector.load %arg2[%c208, %c0_8] : memref<328x128xf32, #tpu.memory_space<vmem>>, vector<1x64xf32>
    %c0_9 = arith.constant 0 : index
    %c0_10 = arith.constant 0 : index
    %11 = vector.load %arg0[%c0_9, %c0_10] : memref<8x4xf32, #tpu.memory_space<vmem>>, vector<8x4xf32>
    %12 = arith.truncf %11 : vector<8x4xf32> to vector<8x4xbf16>
    %13 = arith.truncf %5 : vector<4x64xf32> to vector<4x64xbf16>
    %cst_11 = arith.constant dense<0.000000e+00> : vector<8x64xf32>
    %14 = tpu.matmul %12, %13, %cst_11 {dimension_numbers = #tpu.dot_dimension_numbers<[1], [0], [0], [1], [0, 0, 1, 1], [], []>} : vector<8x4xbf16>, vector<4x64xbf16>, vector<8x64xf32> -> vector<8x64xf32>
    %15 = arith.truncf %14 : vector<8x64xf32> to vector<8x64xbf16>
    %16 = arith.truncf %6 : vector<64x4xf32> to vector<64x4xbf16>
    %cst_12 = arith.constant dense<0.000000e+00> : vector<8x4xf32>
    %17 = tpu.matmul %15, %16, %cst_12 {dimension_numbers = #tpu.dot_dimension_numbers<[1], [0], [0], [1], [0, 0, 1, 1], [], []>} : vector<8x64xbf16>, vector<64x4xbf16>, vector<8x4xf32> -> vector<8x4xf32>
    %18 = tpu.transpose %17, [1, 0] : vector<8x4xf32> -> vector<4x8xf32>
    %cst_13 = arith.constant 1.000000e+00 : f32
    %19 = vector.broadcast %cst_13 : f32 to vector<8x64xf32>
    %20 = tpu.concatenate %14, %19 in 1 : vector<8x64xf32>, vector<8x64xf32> -> vector<8x128xf32>
    %21 = arith.truncf %20 : vector<8x128xf32> to vector<8x128xbf16>
    %22 = vector.extract_strided_slice %17 {offsets = [0, 2], sizes = [8, 1], strides = [1, 1]} : vector<8x4xf32> to vector<8x1xf32>
    %23 = vector.extract_strided_slice %18 {offsets = [0, 0], sizes = [1, 8], strides = [1, 1]} : vector<4x8xf32> to vector<1x8xf32>
    %24 = vector.broadcast %22 : vector<8x1xf32> to vector<8x8xf32>
    %25 = vector.broadcast %23 : vector<1x8xf32> to vector<8x8xf32>
    %26 = arith.addf %24, %25 : vector<8x8xf32>
    %cst_14 = arith.constant 0.000000e+00 : f32
    %27 = vector.broadcast %cst_14 : f32 to vector<8x8xf32>
    %28 = arith.cmpf ogt, %26, %27 : vector<8x8xf32>
    %cst_15 = arith.constant 2.000000e-01 : f32
    %29 = vector.broadcast %cst_15 : f32 to vector<8x8xf32>
    %30 = arith.mulf %29, %26 : vector<8x8xf32>
    %31 = arith.select %28, %26, %30 : vector<8x8xi1>, vector<8x8xf32>
    %32 = arith.addf %31, %4 : vector<8x8xf32>
    %cst_16 = arith.constant dense<0xFF800000> : vector<8xf32>
    %33 = vector.multi_reduction <maximumf>, %32, %cst_16 [1] : vector<8x8xf32> to vector<8xf32>
    %34 = vector.shape_cast %33 : vector<8xf32> to vector<8x1xf32>
    %35 = vector.broadcast %34 : vector<8x1xf32> to vector<8x8xf32>
    %36 = arith.subf %32, %35 : vector<8x8xf32>
    %37 = math.exp %36 : vector<8x8xf32>
    %38 = arith.truncf %37 : vector<8x8xf32> to vector<8x8xbf16>
    %cst_17 = arith.constant dense<0.000000e+00> : vector<8x128xf32>
    %39 = tpu.matmul %38, %21, %cst_17 {dimension_numbers = #tpu.dot_dimension_numbers<[1], [0], [0], [1], [0, 0, 1, 1], [], []>} : vector<8x8xbf16>, vector<8x128xbf16>, vector<8x128xf32> -> vector<8x128xf32>
    %40 = vector.extract_strided_slice %39 {offsets = [0, 64], sizes = [8, 1], strides = [1, 1]} : vector<8x128xf32> to vector<8x1xf32>
    %41 = tpu.reciprocal %40 {approx = true} : vector<8x1xf32> -> vector<8x1xf32>
    %42 = vector.extract_strided_slice %39 {offsets = [0, 0], sizes = [8, 32], strides = [1, 1]} : vector<8x128xf32> to vector<8x32xf32>
    %43 = vector.broadcast %41 : vector<8x1xf32> to vector<8x32xf32>
    %44 = arith.mulf %42, %43 : vector<8x32xf32>
    %45 = vector.extract_strided_slice %17 {offsets = [0, 3], sizes = [8, 1], strides = [1, 1]} : vector<8x4xf32> to vector<8x1xf32>
    %46 = vector.extract_strided_slice %18 {offsets = [1, 0], sizes = [1, 8], strides = [1, 1]} : vector<4x8xf32> to vector<1x8xf32>
    %47 = vector.broadcast %45 : vector<8x1xf32> to vector<8x8xf32>
    %48 = vector.broadcast %46 : vector<1x8xf32> to vector<8x8xf32>
    %49 = arith.addf %47, %48 : vector<8x8xf32>
    %cst_18 = arith.constant 0.000000e+00 : f32
    %50 = vector.broadcast %cst_18 : f32 to vector<8x8xf32>
    %51 = arith.cmpf ogt, %49, %50 : vector<8x8xf32>
    %cst_19 = arith.constant 2.000000e-01 : f32
    %52 = vector.broadcast %cst_19 : f32 to vector<8x8xf32>
    %53 = arith.mulf %52, %49 : vector<8x8xf32>
    %54 = arith.select %51, %49, %53 : vector<8x8xi1>, vector<8x8xf32>
    %55 = arith.addf %54, %4 : vector<8x8xf32>
    %cst_20 = arith.constant dense<0xFF800000> : vector<8xf32>
    %56 = vector.multi_reduction <maximumf>, %55, %cst_20 [1] : vector<8x8xf32> to vector<8xf32>
    %57 = vector.shape_cast %56 : vector<8xf32> to vector<8x1xf32>
    %58 = vector.broadcast %57 : vector<8x1xf32> to vector<8x8xf32>
    %59 = arith.subf %55, %58 : vector<8x8xf32>
    %60 = math.exp %59 : vector<8x8xf32>
    %61 = arith.truncf %60 : vector<8x8xf32> to vector<8x8xbf16>
    %cst_21 = arith.constant dense<0.000000e+00> : vector<8x128xf32>
    %62 = tpu.matmul %61, %21, %cst_21 {dimension_numbers = #tpu.dot_dimension_numbers<[1], [0], [0], [1], [0, 0, 1, 1], [], []>} : vector<8x8xbf16>, vector<8x128xbf16>, vector<8x128xf32> -> vector<8x128xf32>
    %63 = vector.extract_strided_slice %62 {offsets = [0, 64], sizes = [8, 1], strides = [1, 1]} : vector<8x128xf32> to vector<8x1xf32>
    %64 = tpu.reciprocal %63 {approx = true} : vector<8x1xf32> -> vector<8x1xf32>
    %65 = vector.extract_strided_slice %62 {offsets = [0, 32], sizes = [8, 32], strides = [1, 1]} : vector<8x128xf32> to vector<8x32xf32>
    %66 = vector.broadcast %64 : vector<8x1xf32> to vector<8x32xf32>
    %67 = arith.mulf %65, %66 : vector<8x32xf32>
    %68 = tpu.concatenate %44, %67 in 1 : vector<8x32xf32>, vector<8x32xf32> -> vector<8x64xf32>
    %69 = vector.broadcast %7 : vector<1x64xf32> to vector<8x64xf32>
    %70 = arith.addf %68, %69 : vector<8x64xf32>
    %cst_22 = arith.constant 0.000000e+00 : f32
    %71 = vector.broadcast %cst_22 : f32 to vector<8x64xf32>
    %72 = arith.cmpf ogt, %70, %71 : vector<8x64xf32>
    %cst_23 = arith.constant 0.00999999977 : f32
    %73 = vector.broadcast %cst_23 : f32 to vector<8x64xf32>
    %74 = arith.mulf %73, %70 : vector<8x64xf32>
    %75 = arith.select %72, %70, %74 : vector<8x64xi1>, vector<8x64xf32>
    %76 = arith.truncf %75 : vector<8x64xf32> to vector<8x64xbf16>
    %77 = arith.truncf %8 : vector<64x64xf32> to vector<64x64xbf16>
    %cst_24 = arith.constant dense<0.000000e+00> : vector<8x64xf32>
    %78 = tpu.matmul %76, %77, %cst_24 {dimension_numbers = #tpu.dot_dimension_numbers<[1], [0], [0], [1], [0, 0, 1, 1], [], []>} : vector<8x64xbf16>, vector<64x64xbf16>, vector<8x64xf32> -> vector<8x64xf32>
    %79 = arith.truncf %78 : vector<8x64xf32> to vector<8x64xbf16>
    %80 = arith.truncf %9 : vector<64x4xf32> to vector<64x4xbf16>
    %cst_25 = arith.constant dense<0.000000e+00> : vector<8x4xf32>
    %81 = tpu.matmul %79, %80, %cst_25 {dimension_numbers = #tpu.dot_dimension_numbers<[1], [0], [0], [1], [0, 0, 1, 1], [], []>} : vector<8x64xbf16>, vector<64x4xbf16>, vector<8x4xf32> -> vector<8x4xf32>
    %82 = tpu.transpose %81, [1, 0] : vector<8x4xf32> -> vector<4x8xf32>
    %cst_26 = arith.constant 1.000000e+00 : f32
    %83 = vector.broadcast %cst_26 : f32 to vector<8x64xf32>
    %84 = tpu.concatenate %78, %83 in 1 : vector<8x64xf32>, vector<8x64xf32> -> vector<8x128xf32>
    %85 = arith.truncf %84 : vector<8x128xf32> to vector<8x128xbf16>
    %86 = vector.extract_strided_slice %81 {offsets = [0, 2], sizes = [8, 1], strides = [1, 1]} : vector<8x4xf32> to vector<8x1xf32>
    %87 = vector.extract_strided_slice %82 {offsets = [0, 0], sizes = [1, 8], strides = [1, 1]} : vector<4x8xf32> to vector<1x8xf32>
    %88 = vector.broadcast %86 : vector<8x1xf32> to vector<8x8xf32>
    %89 = vector.broadcast %87 : vector<1x8xf32> to vector<8x8xf32>
    %90 = arith.addf %88, %89 : vector<8x8xf32>
    %cst_27 = arith.constant 0.000000e+00 : f32
    %91 = vector.broadcast %cst_27 : f32 to vector<8x8xf32>
    %92 = arith.cmpf ogt, %90, %91 : vector<8x8xf32>
    %cst_28 = arith.constant 2.000000e-01 : f32
    %93 = vector.broadcast %cst_28 : f32 to vector<8x8xf32>
    %94 = arith.mulf %93, %90 : vector<8x8xf32>
    %95 = arith.select %92, %90, %94 : vector<8x8xi1>, vector<8x8xf32>
    %96 = arith.addf %95, %4 : vector<8x8xf32>
    %cst_29 = arith.constant dense<0xFF800000> : vector<8xf32>
    %97 = vector.multi_reduction <maximumf>, %96, %cst_29 [1] : vector<8x8xf32> to vector<8xf32>
    %98 = vector.shape_cast %97 : vector<8xf32> to vector<8x1xf32>
    %99 = vector.broadcast %98 : vector<8x1xf32> to vector<8x8xf32>
    %100 = arith.subf %96, %99 : vector<8x8xf32>
    %101 = math.exp %100 : vector<8x8xf32>
    %102 = arith.truncf %101 : vector<8x8xf32> to vector<8x8xbf16>
    %cst_30 = arith.constant dense<0.000000e+00> : vector<8x128xf32>
    %103 = tpu.matmul %102, %85, %cst_30 {dimension_numbers = #tpu.dot_dimension_numbers<[1], [0], [0], [1], [0, 0, 1, 1], [], []>} : vector<8x8xbf16>, vector<8x128xbf16>, vector<8x128xf32> -> vector<8x128xf32>
    %104 = vector.extract_strided_slice %103 {offsets = [0, 64], sizes = [8, 1], strides = [1, 1]} : vector<8x128xf32> to vector<8x1xf32>
    %105 = tpu.reciprocal %104 {approx = true} : vector<8x1xf32> -> vector<8x1xf32>
    %106 = vector.extract_strided_slice %103 {offsets = [0, 0], sizes = [8, 32], strides = [1, 1]} : vector<8x128xf32> to vector<8x32xf32>
    %107 = vector.broadcast %105 : vector<8x1xf32> to vector<8x32xf32>
    %108 = arith.mulf %106, %107 : vector<8x32xf32>
    %109 = vector.extract_strided_slice %81 {offsets = [0, 3], sizes = [8, 1], strides = [1, 1]} : vector<8x4xf32> to vector<8x1xf32>
    %110 = vector.extract_strided_slice %82 {offsets = [1, 0], sizes = [1, 8], strides = [1, 1]} : vector<4x8xf32> to vector<1x8xf32>
    %111 = vector.broadcast %109 : vector<8x1xf32> to vector<8x8xf32>
    %112 = vector.broadcast %110 : vector<1x8xf32> to vector<8x8xf32>
    %113 = arith.addf %111, %112 : vector<8x8xf32>
    %cst_31 = arith.constant 0.000000e+00 : f32
    %114 = vector.broadcast %cst_31 : f32 to vector<8x8xf32>
    %115 = arith.cmpf ogt, %113, %114 : vector<8x8xf32>
    %cst_32 = arith.constant 2.000000e-01 : f32
    %116 = vector.broadcast %cst_32 : f32 to vector<8x8xf32>
    %117 = arith.mulf %116, %113 : vector<8x8xf32>
    %118 = arith.select %115, %113, %117 : vector<8x8xi1>, vector<8x8xf32>
    %119 = arith.addf %118, %4 : vector<8x8xf32>
    %cst_33 = arith.constant dense<0xFF800000> : vector<8xf32>
    %120 = vector.multi_reduction <maximumf>, %119, %cst_33 [1] : vector<8x8xf32> to vector<8xf32>
    %121 = vector.shape_cast %120 : vector<8xf32> to vector<8x1xf32>
    %122 = vector.broadcast %121 : vector<8x1xf32> to vector<8x8xf32>
    %123 = arith.subf %119, %122 : vector<8x8xf32>
    %124 = math.exp %123 : vector<8x8xf32>
    %125 = arith.truncf %124 : vector<8x8xf32> to vector<8x8xbf16>
    %cst_34 = arith.constant dense<0.000000e+00> : vector<8x128xf32>
    %126 = tpu.matmul %125, %85, %cst_34 {dimension_numbers = #tpu.dot_dimension_numbers<[1], [0], [0], [1], [0, 0, 1, 1], [], []>} : vector<8x8xbf16>, vector<8x128xbf16>, vector<8x128xf32> -> vector<8x128xf32>
    %127 = vector.extract_strided_slice %126 {offsets = [0, 64], sizes = [8, 1], strides = [1, 1]} : vector<8x128xf32> to vector<8x1xf32>
    %128 = tpu.reciprocal %127 {approx = true} : vector<8x1xf32> -> vector<8x1xf32>
    %129 = vector.extract_strided_slice %126 {offsets = [0, 32], sizes = [8, 32], strides = [1, 1]} : vector<8x128xf32> to vector<8x32xf32>
    %130 = vector.broadcast %128 : vector<8x1xf32> to vector<8x32xf32>
    %131 = arith.mulf %129, %130 : vector<8x32xf32>
    %132 = tpu.concatenate %108, %131 in 1 : vector<8x32xf32>, vector<8x32xf32> -> vector<8x64xf32>
    %133 = vector.broadcast %10 : vector<1x64xf32> to vector<8x64xf32>
    %134 = arith.addf %132, %133 : vector<8x64xf32>
    %cst_35 = arith.constant 0.000000e+00 : f32
    %135 = vector.broadcast %cst_35 : f32 to vector<8x64xf32>
    %136 = arith.cmpf ogt, %134, %135 : vector<8x64xf32>
    %cst_36 = arith.constant 0.00999999977 : f32
    %137 = vector.broadcast %cst_36 : f32 to vector<8x64xf32>
    %138 = arith.mulf %137, %134 : vector<8x64xf32>
    %139 = arith.select %136, %134, %138 : vector<8x64xi1>, vector<8x64xf32>
    %c216 = arith.constant 216 : index
    %c0_37 = arith.constant 0 : index
    %140 = vector.load %arg2[%c216, %c0_37] : memref<328x128xf32, #tpu.memory_space<vmem>>, vector<64x128xf32>
    %c280 = arith.constant 280 : index
    %c0_38 = arith.constant 0 : index
    %141 = vector.load %arg2[%c280, %c0_38] : memref<328x128xf32, #tpu.memory_space<vmem>>, vector<32x128xf32>
    %c312 = arith.constant 312 : index
    %c0_39 = arith.constant 0 : index
    %142 = vector.load %arg2[%c312, %c0_39] : memref<328x128xf32, #tpu.memory_space<vmem>>, vector<1x128xf32>
    %143 = arith.truncf %139 : vector<8x64xf32> to vector<8x64xbf16>
    %144 = arith.truncf %140 : vector<64x128xf32> to vector<64x128xbf16>
    %cst_40 = arith.constant dense<0.000000e+00> : vector<8x128xf32>
    %145 = tpu.matmul %143, %144, %cst_40 {dimension_numbers = #tpu.dot_dimension_numbers<[1], [0], [0], [1], [0, 0, 1, 1], [], []>} : vector<8x64xbf16>, vector<64x128xbf16>, vector<8x128xf32> -> vector<8x128xf32>
    %146 = vector.broadcast %142 : vector<1x128xf32> to vector<8x128xf32>
    %147 = arith.addf %145, %146 : vector<8x128xf32>
    %cst_41 = arith.constant 0.000000e+00 : f32
    %148 = vector.broadcast %cst_41 : f32 to vector<1x32xf32>
    %cst_42 = arith.constant 0.000000e+00 : f32
    %149 = vector.broadcast %cst_42 : f32 to vector<1x32xf32>
    %150 = vector.extract_strided_slice %147 {offsets = [0, 0], sizes = [1, 128], strides = [1, 1]} : vector<8x128xf32> to vector<1x128xf32>
    %cst_43 = arith.constant dense<0.000000e+00> : vector<1x128xf32>
    %151 = tpu.matmul %148, %141, %cst_43 {dimension_numbers = #tpu.dot_dimension_numbers<[1], [0], [0], [1], [0, 0, 1, 1], [], []>} : vector<1x32xf32>, vector<32x128xf32>, vector<1x128xf32> -> vector<1x128xf32>
    %152 = arith.addf %150, %151 : vector<1x128xf32>
    %153 = arith.negf %152 : vector<1x128xf32>
    %154 = math.exp %153 : vector<1x128xf32>
    %cst_44 = arith.constant 1.000000e+00 : f32
    %155 = vector.broadcast %cst_44 : f32 to vector<1x128xf32>
    %156 = arith.addf %155, %154 : vector<1x128xf32>
    %157 = arith.divf %155, %156 : vector<1x128xf32>
    %158 = vector.extract_strided_slice %157 {offsets = [0, 0], sizes = [1, 32], strides = [1, 1]} : vector<1x128xf32> to vector<1x32xf32>
    %159 = vector.extract_strided_slice %157 {offsets = [0, 32], sizes = [1, 32], strides = [1, 1]} : vector<1x128xf32> to vector<1x32xf32>
    %160 = vector.extract_strided_slice %157 {offsets = [0, 96], sizes = [1, 32], strides = [1, 1]} : vector<1x128xf32> to vector<1x32xf32>
    %161 = vector.extract_strided_slice %152 {offsets = [0, 64], sizes = [1, 32], strides = [1, 1]} : vector<1x128xf32> to vector<1x32xf32>
    %162 = math.tanh %161 : vector<1x32xf32>
    %163 = arith.mulf %159, %149 : vector<1x32xf32>
    %164 = arith.mulf %158, %162 : vector<1x32xf32>
    %165 = arith.addf %163, %164 : vector<1x32xf32>
    %166 = math.tanh %165 : vector<1x32xf32>
    %167 = arith.mulf %160, %166 : vector<1x32xf32>
    %168 = vector.extract_strided_slice %147 {offsets = [1, 0], sizes = [1, 128], strides = [1, 1]} : vector<8x128xf32> to vector<1x128xf32>
    %cst_45 = arith.constant dense<0.000000e+00> : vector<1x128xf32>
    %169 = tpu.matmul %167, %141, %cst_45 {dimension_numbers = #tpu.dot_dimension_numbers<[1], [0], [0], [1], [0, 0, 1, 1], [], []>} : vector<1x32xf32>, vector<32x128xf32>, vector<1x128xf32> -> vector<1x128xf32>
    %170 = arith.addf %168, %169 : vector<1x128xf32>
    %171 = arith.negf %170 : vector<1x128xf32>
    %172 = math.exp %171 : vector<1x128xf32>
    %cst_46 = arith.constant 1.000000e+00 : f32
    %173 = vector.broadcast %cst_46 : f32 to vector<1x128xf32>
    %174 = arith.addf %173, %172 : vector<1x128xf32>
    %175 = arith.divf %173, %174 : vector<1x128xf32>
    %176 = vector.extract_strided_slice %175 {offsets = [0, 0], sizes = [1, 32], strides = [1, 1]} : vector<1x128xf32> to vector<1x32xf32>
    %177 = vector.extract_strided_slice %175 {offsets = [0, 32], sizes = [1, 32], strides = [1, 1]} : vector<1x128xf32> to vector<1x32xf32>
    %178 = vector.extract_strided_slice %175 {offsets = [0, 96], sizes = [1, 32], strides = [1, 1]} : vector<1x128xf32> to vector<1x32xf32>
    %179 = vector.extract_strided_slice %170 {offsets = [0, 64], sizes = [1, 32], strides = [1, 1]} : vector<1x128xf32> to vector<1x32xf32>
    %180 = math.tanh %179 : vector<1x32xf32>
    %181 = arith.mulf %177, %165 : vector<1x32xf32>
    %182 = arith.mulf %176, %180 : vector<1x32xf32>
    %183 = arith.addf %181, %182 : vector<1x32xf32>
    %184 = math.tanh %183 : vector<1x32xf32>
    %185 = arith.mulf %178, %184 : vector<1x32xf32>
    %186 = vector.extract_strided_slice %147 {offsets = [2, 0], sizes = [1, 128], strides = [1, 1]} : vector<8x128xf32> to vector<1x128xf32>
    %cst_47 = arith.constant dense<0.000000e+00> : vector<1x128xf32>
    %187 = tpu.matmul %185, %141, %cst_47 {dimension_numbers = #tpu.dot_dimension_numbers<[1], [0], [0], [1], [0, 0, 1, 1], [], []>} : vector<1x32xf32>, vector<32x128xf32>, vector<1x128xf32> -> vector<1x128xf32>
    %188 = arith.addf %186, %187 : vector<1x128xf32>
    %189 = arith.negf %188 : vector<1x128xf32>
    %190 = math.exp %189 : vector<1x128xf32>
    %cst_48 = arith.constant 1.000000e+00 : f32
    %191 = vector.broadcast %cst_48 : f32 to vector<1x128xf32>
    %192 = arith.addf %191, %190 : vector<1x128xf32>
    %193 = arith.divf %191, %192 : vector<1x128xf32>
    %194 = vector.extract_strided_slice %193 {offsets = [0, 0], sizes = [1, 32], strides = [1, 1]} : vector<1x128xf32> to vector<1x32xf32>
    %195 = vector.extract_strided_slice %193 {offsets = [0, 32], sizes = [1, 32], strides = [1, 1]} : vector<1x128xf32> to vector<1x32xf32>
    %196 = vector.extract_strided_slice %193 {offsets = [0, 96], sizes = [1, 32], strides = [1, 1]} : vector<1x128xf32> to vector<1x32xf32>
    %197 = vector.extract_strided_slice %188 {offsets = [0, 64], sizes = [1, 32], strides = [1, 1]} : vector<1x128xf32> to vector<1x32xf32>
    %198 = math.tanh %197 : vector<1x32xf32>
    %199 = arith.mulf %195, %183 : vector<1x32xf32>
    %200 = arith.mulf %194, %198 : vector<1x32xf32>
    %201 = arith.addf %199, %200 : vector<1x32xf32>
    %202 = math.tanh %201 : vector<1x32xf32>
    %203 = arith.mulf %196, %202 : vector<1x32xf32>
    %204 = vector.extract_strided_slice %147 {offsets = [3, 0], sizes = [1, 128], strides = [1, 1]} : vector<8x128xf32> to vector<1x128xf32>
    %cst_49 = arith.constant dense<0.000000e+00> : vector<1x128xf32>
    %205 = tpu.matmul %203, %141, %cst_49 {dimension_numbers = #tpu.dot_dimension_numbers<[1], [0], [0], [1], [0, 0, 1, 1], [], []>} : vector<1x32xf32>, vector<32x128xf32>, vector<1x128xf32> -> vector<1x128xf32>
    %206 = arith.addf %204, %205 : vector<1x128xf32>
    %207 = arith.negf %206 : vector<1x128xf32>
    %208 = math.exp %207 : vector<1x128xf32>
    %cst_50 = arith.constant 1.000000e+00 : f32
    %209 = vector.broadcast %cst_50 : f32 to vector<1x128xf32>
    %210 = arith.addf %209, %208 : vector<1x128xf32>
    %211 = arith.divf %209, %210 : vector<1x128xf32>
    %212 = vector.extract_strided_slice %211 {offsets = [0, 0], sizes = [1, 32], strides = [1, 1]} : vector<1x128xf32> to vector<1x32xf32>
    %213 = vector.extract_strided_slice %211 {offsets = [0, 32], sizes = [1, 32], strides = [1, 1]} : vector<1x128xf32> to vector<1x32xf32>
    %214 = vector.extract_strided_slice %211 {offsets = [0, 96], sizes = [1, 32], strides = [1, 1]} : vector<1x128xf32> to vector<1x32xf32>
    %215 = vector.extract_strided_slice %206 {offsets = [0, 64], sizes = [1, 32], strides = [1, 1]} : vector<1x128xf32> to vector<1x32xf32>
    %216 = math.tanh %215 : vector<1x32xf32>
    %217 = arith.mulf %213, %201 : vector<1x32xf32>
    %218 = arith.mulf %212, %216 : vector<1x32xf32>
    %219 = arith.addf %217, %218 : vector<1x32xf32>
    %220 = math.tanh %219 : vector<1x32xf32>
    %221 = arith.mulf %214, %220 : vector<1x32xf32>
    %222 = vector.extract_strided_slice %147 {offsets = [4, 0], sizes = [1, 128], strides = [1, 1]} : vector<8x128xf32> to vector<1x128xf32>
    %cst_51 = arith.constant dense<0.000000e+00> : vector<1x128xf32>
    %223 = tpu.matmul %221, %141, %cst_51 {dimension_numbers = #tpu.dot_dimension_numbers<[1], [0], [0], [1], [0, 0, 1, 1], [], []>} : vector<1x32xf32>, vector<32x128xf32>, vector<1x128xf32> -> vector<1x128xf32>
    %224 = arith.addf %222, %223 : vector<1x128xf32>
    %225 = arith.negf %224 : vector<1x128xf32>
    %226 = math.exp %225 : vector<1x128xf32>
    %cst_52 = arith.constant 1.000000e+00 : f32
    %227 = vector.broadcast %cst_52 : f32 to vector<1x128xf32>
    %228 = arith.addf %227, %226 : vector<1x128xf32>
    %229 = arith.divf %227, %228 : vector<1x128xf32>
    %230 = vector.extract_strided_slice %229 {offsets = [0, 0], sizes = [1, 32], strides = [1, 1]} : vector<1x128xf32> to vector<1x32xf32>
    %231 = vector.extract_strided_slice %229 {offsets = [0, 32], sizes = [1, 32], strides = [1, 1]} : vector<1x128xf32> to vector<1x32xf32>
    %232 = vector.extract_strided_slice %229 {offsets = [0, 96], sizes = [1, 32], strides = [1, 1]} : vector<1x128xf32> to vector<1x32xf32>
    %233 = vector.extract_strided_slice %224 {offsets = [0, 64], sizes = [1, 32], strides = [1, 1]} : vector<1x128xf32> to vector<1x32xf32>
    %234 = math.tanh %233 : vector<1x32xf32>
    %235 = arith.mulf %231, %219 : vector<1x32xf32>
    %236 = arith.mulf %230, %234 : vector<1x32xf32>
    %237 = arith.addf %235, %236 : vector<1x32xf32>
    %238 = math.tanh %237 : vector<1x32xf32>
    %239 = arith.mulf %232, %238 : vector<1x32xf32>
    %240 = vector.extract_strided_slice %147 {offsets = [5, 0], sizes = [1, 128], strides = [1, 1]} : vector<8x128xf32> to vector<1x128xf32>
    %cst_53 = arith.constant dense<0.000000e+00> : vector<1x128xf32>
    %241 = tpu.matmul %239, %141, %cst_53 {dimension_numbers = #tpu.dot_dimension_numbers<[1], [0], [0], [1], [0, 0, 1, 1], [], []>} : vector<1x32xf32>, vector<32x128xf32>, vector<1x128xf32> -> vector<1x128xf32>
    %242 = arith.addf %240, %241 : vector<1x128xf32>
    %243 = arith.negf %242 : vector<1x128xf32>
    %244 = math.exp %243 : vector<1x128xf32>
    %cst_54 = arith.constant 1.000000e+00 : f32
    %245 = vector.broadcast %cst_54 : f32 to vector<1x128xf32>
    %246 = arith.addf %245, %244 : vector<1x128xf32>
    %247 = arith.divf %245, %246 : vector<1x128xf32>
    %248 = vector.extract_strided_slice %247 {offsets = [0, 0], sizes = [1, 32], strides = [1, 1]} : vector<1x128xf32> to vector<1x32xf32>
    %249 = vector.extract_strided_slice %247 {offsets = [0, 32], sizes = [1, 32], strides = [1, 1]} : vector<1x128xf32> to vector<1x32xf32>
    %250 = vector.extract_strided_slice %247 {offsets = [0, 96], sizes = [1, 32], strides = [1, 1]} : vector<1x128xf32> to vector<1x32xf32>
    %251 = vector.extract_strided_slice %242 {offsets = [0, 64], sizes = [1, 32], strides = [1, 1]} : vector<1x128xf32> to vector<1x32xf32>
    %252 = math.tanh %251 : vector<1x32xf32>
    %253 = arith.mulf %249, %237 : vector<1x32xf32>
    %254 = arith.mulf %248, %252 : vector<1x32xf32>
    %255 = arith.addf %253, %254 : vector<1x32xf32>
    %256 = math.tanh %255 : vector<1x32xf32>
    %257 = arith.mulf %250, %256 : vector<1x32xf32>
    %258 = vector.extract_strided_slice %147 {offsets = [6, 0], sizes = [1, 128], strides = [1, 1]} : vector<8x128xf32> to vector<1x128xf32>
    %cst_55 = arith.constant dense<0.000000e+00> : vector<1x128xf32>
    %259 = tpu.matmul %257, %141, %cst_55 {dimension_numbers = #tpu.dot_dimension_numbers<[1], [0], [0], [1], [0, 0, 1, 1], [], []>} : vector<1x32xf32>, vector<32x128xf32>, vector<1x128xf32> -> vector<1x128xf32>
    %260 = arith.addf %258, %259 : vector<1x128xf32>
    %261 = arith.negf %260 : vector<1x128xf32>
    %262 = math.exp %261 : vector<1x128xf32>
    %cst_56 = arith.constant 1.000000e+00 : f32
    %263 = vector.broadcast %cst_56 : f32 to vector<1x128xf32>
    %264 = arith.addf %263, %262 : vector<1x128xf32>
    %265 = arith.divf %263, %264 : vector<1x128xf32>
    %266 = vector.extract_strided_slice %265 {offsets = [0, 0], sizes = [1, 32], strides = [1, 1]} : vector<1x128xf32> to vector<1x32xf32>
    %267 = vector.extract_strided_slice %265 {offsets = [0, 32], sizes = [1, 32], strides = [1, 1]} : vector<1x128xf32> to vector<1x32xf32>
    %268 = vector.extract_strided_slice %265 {offsets = [0, 96], sizes = [1, 32], strides = [1, 1]} : vector<1x128xf32> to vector<1x32xf32>
    %269 = vector.extract_strided_slice %260 {offsets = [0, 64], sizes = [1, 32], strides = [1, 1]} : vector<1x128xf32> to vector<1x32xf32>
    %270 = math.tanh %269 : vector<1x32xf32>
    %271 = arith.mulf %267, %255 : vector<1x32xf32>
    %272 = arith.mulf %266, %270 : vector<1x32xf32>
    %273 = arith.addf %271, %272 : vector<1x32xf32>
    %274 = math.tanh %273 : vector<1x32xf32>
    %275 = arith.mulf %268, %274 : vector<1x32xf32>
    %276 = vector.extract_strided_slice %147 {offsets = [7, 0], sizes = [1, 128], strides = [1, 1]} : vector<8x128xf32> to vector<1x128xf32>
    %cst_57 = arith.constant dense<0.000000e+00> : vector<1x128xf32>
    %277 = tpu.matmul %275, %141, %cst_57 {dimension_numbers = #tpu.dot_dimension_numbers<[1], [0], [0], [1], [0, 0, 1, 1], [], []>} : vector<1x32xf32>, vector<32x128xf32>, vector<1x128xf32> -> vector<1x128xf32>
    %278 = arith.addf %276, %277 : vector<1x128xf32>
    %279 = arith.negf %278 : vector<1x128xf32>
    %280 = math.exp %279 : vector<1x128xf32>
    %cst_58 = arith.constant 1.000000e+00 : f32
    %281 = vector.broadcast %cst_58 : f32 to vector<1x128xf32>
    %282 = arith.addf %281, %280 : vector<1x128xf32>
    %283 = arith.divf %281, %282 : vector<1x128xf32>
    %284 = vector.extract_strided_slice %283 {offsets = [0, 0], sizes = [1, 32], strides = [1, 1]} : vector<1x128xf32> to vector<1x32xf32>
    %285 = vector.extract_strided_slice %283 {offsets = [0, 32], sizes = [1, 32], strides = [1, 1]} : vector<1x128xf32> to vector<1x32xf32>
    %286 = vector.extract_strided_slice %283 {offsets = [0, 96], sizes = [1, 32], strides = [1, 1]} : vector<1x128xf32> to vector<1x32xf32>
    %287 = vector.extract_strided_slice %278 {offsets = [0, 64], sizes = [1, 32], strides = [1, 1]} : vector<1x128xf32> to vector<1x32xf32>
    %288 = math.tanh %287 : vector<1x32xf32>
    %289 = arith.mulf %285, %273 : vector<1x32xf32>
    %290 = arith.mulf %284, %288 : vector<1x32xf32>
    %291 = arith.addf %289, %290 : vector<1x32xf32>
    %292 = math.tanh %291 : vector<1x32xf32>
    %293 = arith.mulf %286, %292 : vector<1x32xf32>
    %c320 = arith.constant 320 : index
    %c0_59 = arith.constant 0 : index
    %294 = vector.load %arg2[%c320, %c0_59] : memref<328x128xf32, #tpu.memory_space<vmem>>, vector<1x32xf32>
    %c321 = arith.constant 321 : index
    %c0_60 = arith.constant 0 : index
    %295 = vector.load %arg2[%c321, %c0_60] : memref<328x128xf32, #tpu.memory_space<vmem>>, vector<1x1xf32>
    %296 = arith.mulf %293, %294 : vector<1x32xf32>
    %cst_61 = arith.constant dense<0.000000e+00> : vector<1xf32>
    %297 = vector.multi_reduction <add>, %296, %cst_61 [1] : vector<1x32xf32> to vector<1xf32>
    %298 = vector.shape_cast %297 : vector<1xf32> to vector<1x1xf32>
    %299 = arith.addf %298, %295 : vector<1x1xf32>
    %c0_62 = arith.constant 0 : index
    %c0_63 = arith.constant 0 : index
    %300 = vector.load %arg3[%c0_62, %c0_63] : memref<1x1xf32, #tpu.memory_space<vmem>>, vector<1x1xf32>
    tpu.vector_store %arg3[%c0_62, %c0_63], %299 {strides = array<i32>} : memref<1x1xf32, #tpu.memory_space<vmem>>, vector<1x1xf32>,
    return
  }
}

</mosaic_0001>

<llo_original>
// kernel: tpu_custom_call.1
$region0: #{tpu_custom_call.1}
  #allocation0 [shape = 'u32[]', space=smem, size = 0x4, offset = 0x4, fixed_abs, tag = 'smem constant byte address 0x4 - core index']
  #allocation1 [shape = 'u32[72,128]{1,0:T(1,128)}', space=vmem, size = 0x9000, scoped, tag = 'internal scratch']
  %s0 = inlined_call_operand.vmem [shape: f32[8,4], index: 0, kind: input, shape index: {}]
  %s1 = inlined_call_operand.vmem [shape: f32[8,8], index: 1, kind: input, shape index: {}]
  %s2 = inlined_call_operand.hbm [shape: f32[328,128], index: 2, kind: input, shape index: {}]
  %s3 = inlined_call_operand.hbm [shape: f32[1,1], index: 3, kind: output, shape index: {}]
  %s4 = sld [smem:[#allocation0]]
  $region26: #{tpu_custom_call.1} parent=0
    _
  %s6 = ssub.s32 1, %s4
  %s7 = scalar_select 0, %s6, %s4
  $region1: #{tpu_custom_call.1} parent=0
    #allocation2 [shape = 'u8[167936]{0}', space=vmem, size = 0x29000, scoped, tag = 'input window, operand 2, single buffered']
    #allocation3 [shape = 's32[1]{0}', space=sflag, size = 0x4, scoped, tag = 'scoped memory for tpu_custom_call.1']
    #allocation4 [shape = 's32[1]{0}', space=sflag, size = 0x4, scoped, tag = 'scoped memory for tpu_custom_call.1']
    #allocation5 [shape = 'u8[512]{0}', space=vmem, size = 0x400, scoped, tag = 'output window, operand 0, single buffered']
    %8 = vsyncpa [#allocation3], 0
    %9 = vsyncpa [#allocation4], 0
    // Predicated region
    $region2: #{tpu_custom_call.1} parent=1 // pred_check
      _
    $region3: #{tpu_custom_call.1} parent=1 // pred_check_branch
      %11 = sbr.rel (0) target = $region5
    $region4: #{tpu_custom_call.1} parent=1 // pred_region
      _
    $region5: #{tpu_custom_call.1} parent=1 // pred_fallthru
      _
    // Predicated region
    $region6: #{tpu_custom_call.1} parent=1 // pred_check
      _
    $region7: #{tpu_custom_call.1} parent=1 // pred_check_branch
      %13 = sbr.rel (0) target = $region9
    $region8: #{tpu_custom_call.1} parent=1 // pred_region
      _
    $region9: #{tpu_custom_call.1} parent=1 // pred_fallthru
      _
    // Predicated region
    $region10: #{tpu_custom_call.1} parent=1 // pred_check
      _
    $region11: #{tpu_custom_call.1} parent=1 // pred_check_branch
      %15 = sbr.rel (0) target = $region13
    $region12: #{tpu_custom_call.1} parent=1 // pred_region
      %17 = vsyncadd [#allocation3], 0
      %s18 = sshll.u32 %s2, 4
      %s19 = int_to_ptr.hbm [resolvable:$true] %s18
      %s20 = sshll.u32 [#allocation2], 4
      %s21 = int_to_ptr.vmem [resolvable:$true] %s20
      %26 = dma.hbm_to_vmem [thread:$0]  %s19, 5248, %s21, [#allocation3], 128, 128, 8
    $region13: #{tpu_custom_call.1} parent=1 // pred_fallthru
      _
    // Predicated region
    $region14: #{tpu_custom_call.1} parent=1 // pred_check
      _
    $region15: #{tpu_custom_call.1} parent=1 // pred_check_branch
      %28 = sbr.rel (0) target = $region17
    $region16: #{tpu_custom_call.1} parent=1 // pred_region
      %30 = dma.done [#allocation3], 5248
    $region17: #{tpu_custom_call.1} parent=1 // pred_fallthru
      _
    %v32 = vld [vmem:[%s1] sm:$0xff]
    %v33 = vsub.f32 %v32, 1.0
    %v34 = vmul.f32 %v33, 1e+30
    %v35 = vld [vmem:[#allocation2] sm:$0xf]
    %v36 = vld [vmem:[#allocation2 + $0x8] sm:$0xff]
    %v37 = vld [vmem:[#allocation2 + $0x10] sm:$0xff]
    %v38 = vld [vmem:[#allocation2 + $0x18] sm:$0xff]
    %v39 = vld [vmem:[#allocation2 + $0x20] sm:$0xff]
    %v40 = vld [vmem:[#allocation2 + $0x28] sm:$0xff]
    %v41 = vld [vmem:[#allocation2 + $0x30] sm:$0xff]
    %v42 = vld [vmem:[#allocation2 + $0x38] sm:$0xff]
    %v43 = vld [vmem:[#allocation2 + $0x40] sm:$0xff]
    %v44 = vld [vmem:[#allocation2 + $0x48] sm:$0x1]
    %v45 = vld [vmem:[#allocation2 + $0x50] sm:$0xff]
    %v46 = vld [vmem:[#allocation2 + $0x58] sm:$0xff]
    %v47 = vld [vmem:[#allocation2 + $0x60] sm:$0xff]
    %v48 = vld [vmem:[#allocation2 + $0x68] sm:$0xff]
    %v49 = vld [vmem:[#allocation2 + $0x70] sm:$0xff]
    %v50 = vld [vmem:[#allocation2 + $0x78] sm:$0xff]
    %v51 = vld [vmem:[#allocation2 + $0x80] sm:$0xff]
    %v52 = vld [vmem:[#allocation2 + $0x88] sm:$0xff]
    %v53 = vld [vmem:[#allocation2 + $0x90] sm:$0xff]
    %v54 = vld [vmem:[#allocation2 + $0x98] sm:$0xff]
    %v55 = vld [vmem:[#allocation2 + $0xa0] sm:$0xff]
    %v56 = vld [vmem:[#allocation2 + $0xa8] sm:$0xff]
    %v57 = vld [vmem:[#allocation2 + $0xb0] sm:$0xff]
    %v58 = vld [vmem:[#allocation2 + $0xb8] sm:$0xff]
    %v59 = vld [vmem:[#allocation2 + $0xc0] sm:$0xff]
    %v60 = vld [vmem:[#allocation2 + $0xc8] sm:$0xff]
    %v61 = vld [vmem:[#allocation2 + $0xd0] sm:$0x1]
    %v62 = vld [vmem:[%s0] sm:$0xff]
    %v63 = vpack.c.bf16 %v62, %v62
    %v64 = vpack.c.bf16 %v35, %v35
    %vm65 = vcmask 31744
    %v67 = vsel %vm65, %v63, 0
    %vm69 = vcmask 1041408
    %v71 = vsel %vm69, %v64, 0
    %73 = vmatpush.bf16.msra.mxu0 0
    %74 = vmatpush.bf16.msra.mxu0 0
    %75 = vmatpush.bf16.msra.mxu0 0
    %76 = vmatpush.bf16.msra.mxu0 0
    %77 = vmatpush.bf16.msra.mxu0 0
    %78 = vmatpush.bf16.msra.mxu0 0
    %79 = vmatpush.bf16.msra.mxu0 0
    %80 = vmatpush.bf16.msra.mxu0 %v71
    %81 = vmatmul.bf16.gmra.mxu0 %v67
    %v82 = vpop.f32.mrf.mxu0
    %v83 = vadd.f32 0.0, %v82
    %v84 = vpop.f32.mrf.mxu0
    %85 = vdwg.mxu0
    %v86 = vpack.c.bf16 %v83, %v83
    %v87 = vpack.c.bf16 %v37, %v36
    %v88 = vpack.c.bf16 %v39, %v38
    %v89 = vpack.c.bf16 %v41, %v40
    %v90 = vpack.c.bf16 %v43, %v42
    %vm91 = vcmask 523264
    %v93 = vsel %vm91, %v86, 0
    %95 = vmatpush.bf16.msra.mxu0 0
    %96 = vmatpush.bf16.msra.mxu0 0
    %97 = vmatpush.bf16.msra.mxu0 0
    %98 = vmatpush.bf16.msra.mxu0 0
    %99 = vmatpush.bf16.msra.mxu0 %v90
    %100 = vmatpush.bf16.msra.mxu0 %v89
    %101 = vmatpush.bf16.msra.mxu0 %v88
    %102 = vmatpush.bf16.msra.mxu0 %v87
    %103 = vmatmul.bf16.gmra.mxu0 %v93
    %v104 = vpop.f32.mrf.mxu0
    %v105 = vadd.f32 0.0, %v104
    %v106 = vpop.f32.mrf.mxu0
    %107 = vdwg.mxu0
    %108 = vxpose.xlu0.b32.start [1/16] %v105, 128
    %109 = vxpose.xlu0.b32.cont [2/16] 0.0, 128
    %110 = vxpose.xlu0.b32.cont [3/16] 0.0, 128
    %111 = vxpose.xlu0.b32.cont [4/16] 0.0, 128
    %112 = vxpose.xlu0.b32.cont [5/16] 0.0, 128
    %113 = vxpose.xlu0.b32.cont [6/16] 0.0, 128
    %114 = vxpose.xlu0.b32.cont [7/16] 0.0, 128
    %115 = vxpose.xlu0.b32.cont [8/16] 0.0, 128
    %116 = vxpose.xlu0.b32.cont [9/16] 0.0, 128
    %117 = vxpose.xlu0.b32.cont [10/16] 0.0, 128
    %118 = vxpose.xlu0.b32.cont [11/16] 0.0, 128
    %119 = vxpose.xlu0.b32.cont [12/16] 0.0, 128
    %120 = vxpose.xlu0.b32.cont [13/16] 0.0, 128
    %121 = vxpose.xlu0.b32.cont [14/16] 0.0, 128
    %122 = vxpose.xlu0.b32.cont [15/16] 0.0, 128
    %123 = vxpose.xlu0.b32.end [16/16] 0.0, 128
    %v124 = vpop.trf.xlu0
    %v125 = vpop.trf.xlu0
    %v126 = vpop.trf.xlu0
    %v127 = vpop.trf.xlu0
    %v128 = vpop.trf.xlu0
    %v129 = vpop.trf.xlu0
    %v130 = vpop.trf.xlu0
    %v131 = vpop.trf.xlu0
    %v132 = vpop.trf.xlu0
    %v133 = vpop.trf.xlu0
    %v134 = vpop.trf.xlu0
    %v135 = vpop.trf.xlu0
    %v136 = vpop.trf.xlu0
    %v137 = vpop.trf.xlu0
    %v138 = vpop.trf.xlu0
    %v139 = vpop.trf.xlu0
    %v140 = vsel %vm91, %v83, 1.0
    %v141 = vpack.c.bf16 %v140, %v140
    %143 = vset.pattern.permute.xlu0 2
    %144 = vperm.xlu0 %143, %v105
    %v145 = vpop.permute.xlu0 %144
    %v147 = vperm.slane %v124, 0
    %v148 = vadd.f32 %v145, %v147
    %vm149 = vcmp.gt.f32.partialorder %v148, 0.0
    %v150 = vmul.f32 %v148, 0.2
    %v151 = vsel %vm149, %v148, %v150
    %v152 = vadd.f32 %v151, %v34
    %vm153 = vcmask 64512
    %v154 = vsel %vm153, %v152, -inf
    %155 = vmax.xlane.f32.xlu0 %v154
    %v156 = vpop.xlane.xlu0 %155
    %v157 = vsub.f32 %v152, %v156
    %v158 = vmul.f32 %v157, 1.442695
    %v159 = vpow.pop %v158
    %v160 = vpack.c.bf16 %v159, %v159
    %v162 = vsel %vm153, %v160, 0
    %vm164 = vcmask 1043456
    %v166 = vsel %vm164, %v141, 0
    %168 = vmatpush.bf16.msra.mxu0 0
    %169 = vmatpush.bf16.msra.mxu0 0
    %170 = vmatpush.bf16.msra.mxu0 0
    %171 = vmatpush.bf16.msra.mxu0 0
    %172 = vmatpush.bf16.msra.mxu0 0
    %173 = vmatpush.bf16.msra.mxu0 0
    %174 = vmatpush.bf16.msra.mxu0 0
    %175 = vmatpush.bf16.msra.mxu0 %v166
    %176 = vmatmul.bf16.gmra.mxu0 %v162
    %v177 = vpop.f32.mrf.mxu0
    %v178 = vadd.f32 0.0, %v177
    %v179 = vpop.f32.mrf.mxu0
    %180 = vdwg.mxu0
    %v181 = vrcp.pop %v178
    %183 = vset.pattern.permute.xlu0 64
    %184 = vperm.xlu0 %183, %v181
    %v185 = vpop.permute.xlu0 %184
    %v187 = vmul.f32 %v178, %v185
    %188 = vset.pattern.permute.xlu0 3
    %189 = vperm.xlu0 %188, %v105
    %v190 = vpop.permute.xlu0 %189
    %v192 = vperm.slane %v124, 1
    %v193 = vadd.f32 %v190, %v192
    %vm194 = vcmp.gt.f32.partialorder %v193, 0.0
    %v195 = vmul.f32 %v193, 0.2
    %v196 = vsel %vm194, %v193, %v195
    %v197 = vadd.f32 %v196, %v34
    %v198 = vsel %vm153, %v197, -inf
    %199 = vmax.xlane.f32.xlu0 %v198
    %v200 = vpop.xlane.xlu0 %199
    %v201 = vsub.f32 %v197, %v200
    %v202 = vmul.f32 %v201, 1.442695
    %v203 = vpow.pop %v202
    %v204 = vpack.c.bf16 %v203, %v203
    %v206 = vsel %vm153, %v204, 0
    %208 = vmatpush.bf16.msra.mxu0 0
    %209 = vmatpush.bf16.msra.mxu0 0
    %210 = vmatpush.bf16.msra.mxu0 0
    %211 = vmatpush.bf16.msra.mxu0 0
    %212 = vmatpush.bf16.msra.mxu0 0
    %213 = vmatpush.bf16.msra.mxu0 0
    %214 = vmatpush.bf16.msra.mxu0 0
    %215 = vmatpush.bf16.msra.mxu0 %v166
    %216 = vmatmul.bf16.gmra.mxu0 %v206
    %v217 = vpop.f32.mrf.mxu0
    %v218 = vadd.f32 0.0, %v217
    %v219 = vpop.f32.mrf.mxu0
    %220 = vdwg.mxu0
    %v221 = vrcp.pop %v218
    %223 = vset.pattern.permute.xlu0 64
    %224 = vperm.xlu0 %223, %v221
    %v225 = vpop.permute.xlu0 %224
    %v227 = vmul.f32 %v218, %v225
    %vm228 = vcmask 261120
    %v229 = vsel %vm228, %v187, %v227
    %v230 = vperm.slane %v44, 0
    %v231 = vadd.f32 %v229, %v230
    %vm232 = vcmp.gt.f32.partialorder %v231, 0.0
    %v233 = vmul.f32 %v231, 0.01
    %v234 = vsel %vm232, %v231, %v233
    %v235 = vpack.c.bf16 %v234, %v234
    %v236 = vpack.c.bf16 %v46, %v45
    %v237 = vpack.c.bf16 %v48, %v47
    %v238 = vpack.c.bf16 %v50, %v49
    %v239 = vpack.c.bf16 %v52, %v51
    %v241 = vsel %vm91, %v235, 0
    %243 = vmatpush.bf16.msra.mxu0 0
    %244 = vmatpush.bf16.msra.mxu0 0
    %245 = vmatpush.bf16.msra.mxu0 0
    %246 = vmatpush.bf16.msra.mxu0 0
    %247 = vmatpush.bf16.msra.mxu0 %v239
    %248 = vmatpush.bf16.msra.mxu0 %v238
    %249 = vmatpush.bf16.msra.mxu0 %v237
    %250 = vmatpush.bf16.msra.mxu0 %v236
    %251 = vmatmul.bf16.gmra.mxu0 %v241
    %v252 = vpop.f32.mrf.mxu0
    %v253 = vadd.f32 0.0, %v252
    %v254 = vpop.f32.mrf.mxu0
    %255 = vdwg.mxu0
    %v256 = vpack.c.bf16 %v253, %v253
    %v257 = vpack.c.bf16 %v54, %v53
    %v258 = vpack.c.bf16 %v56, %v55
    %v259 = vpack.c.bf16 %v58, %v57
    %v260 = vpack.c.bf16 %v60, %v59
    %v262 = vsel %vm91, %v256, 0
    %264 = vmatpush.bf16.msra.mxu0 0
    %265 = vmatpush.bf16.msra.mxu0 0
    %266 = vmatpush.bf16.msra.mxu0 0
    %267 = vmatpush.bf16.msra.mxu0 0
    %268 = vmatpush.bf16.msra.mxu0 %v260
    %269 = vmatpush.bf16.msra.mxu0 %v259
    %270 = vmatpush.bf16.msra.mxu0 %v258
    %271 = vmatpush.bf16.msra.mxu0 %v257
    %272 = vmatmul.bf16.gmra.mxu0 %v262
    %v273 = vpop.f32.mrf.mxu0
    %v274 = vadd.f32 0.0, %v273
    %v275 = vpop.f32.mrf.mxu0
    %276 = vdwg.mxu0
    %277 = vxpose.xlu0.b32.start [1/16] %v274, 128
    %278 = vxpose.xlu0.b32.cont [2/16] 0.0, 128
    %279 = vxpose.xlu0.b32.cont [3/16] 0.0, 128
    %280 = vxpose.xlu0.b32.cont [4/16] 0.0, 128
    %281 = vxpose.xlu0.b32.cont [5/16] 0.0, 128
    %282 = vxpose.xlu0.b32.cont [6/16] 0.0, 128
    %283 = vxpose.xlu0.b32.cont [7/16] 0.0, 128
    %284 = vxpose.xlu0.b32.cont [8/16] 0.0, 128
    %285 = vxpose.xlu0.b32.cont [9/16] 0.0, 128
    %286 = vxpose.xlu0.b32.cont [10/16] 0.0, 128
    %287 = vxpose.xlu0.b32.cont [11/16] 0.0, 128
    %288 = vxpose.xlu0.b32.cont [12/16] 0.0, 128
    %289 = vxpose.xlu0.b32.cont [13/16] 0.0, 128
    %290 = vxpose.xlu0.b32.cont [14/16] 0.0, 128
    %291 = vxpose.xlu0.b32.cont [15/16] 0.0, 128
    %292 = vxpose.xlu0.b32.end [16/16] 0.0, 128
    %v293 = vpop.trf.xlu0
    %v294 = vpop.trf.xlu0
    %v295 = vpop.trf.xlu0
    %v296 = vpop.trf.xlu0
    %v297 = vpop.trf.xlu0
    %v298 = vpop.trf.xlu0
    %v299 = vpop.trf.xlu0
    %v300 = vpop.trf.xlu0
    %v301 = vpop.trf.xlu0
    %v302 = vpop.trf.xlu0
    %v303 = vpop.trf.xlu0
    %v304 = vpop.trf.xlu0
    %v305 = vpop.trf.xlu0
    %v306 = vpop.trf.xlu0
    %v307 = vpop.trf.xlu0
    %v308 = vpop.trf.xlu0
    %v309 = vsel %vm91, %v253, 1.0
    %v310 = vpack.c.bf16 %v309, %v309
    %312 = vset.pattern.permute.xlu0 2
    %313 = vperm.xlu0 %312, %v274
    %v314 = vpop.permute.xlu0 %313
    %v316 = vperm.slane %v293, 0
    %v317 = vadd.f32 %v314, %v316
    %vm318 = vcmp.gt.f32.partialorder %v317, 0.0
    %v319 = vmul.f32 %v317, 0.2
    %v320 = vsel %vm318, %v317, %v319
    %v321 = vadd.f32 %v320, %v34
    %v322 = vsel %vm153, %v321, -inf
    %323 = vmax.xlane.f32.xlu0 %v322
    %v324 = vpop.xlane.xlu0 %323
    %v325 = vsub.f32 %v321, %v324
    %v326 = vmul.f32 %v325, 1.442695
    %v327 = vpow.pop %v326
    %v328 = vpack.c.bf16 %v327, %v327
    %v330 = vsel %vm153, %v328, 0
    %v333 = vsel %vm164, %v310, 0
    %335 = vmatpush.bf16.msra.mxu0 0
    %336 = vmatpush.bf16.msra.mxu0 0
    %337 = vmatpush.bf16.msra.mxu0 0
    %338 = vmatpush.bf16.msra.mxu0 0
    %339 = vmatpush.bf16.msra.mxu0 0
    %340 = vmatpush.bf16.msra.mxu0 0
    %341 = vmatpush.bf16.msra.mxu0 0
    %342 = vmatpush.bf16.msra.mxu0 %v333
    %343 = vmatmul.bf16.gmra.mxu0 %v330
    %v344 = vpop.f32.mrf.mxu0
    %v345 = vadd.f32 0.0, %v344
    %v346 = vpop.f32.mrf.mxu0
    %347 = vdwg.mxu0
    %v348 = vrcp.pop %v345
    %350 = vset.pattern.permute.xlu0 64
    %351 = vperm.xlu0 %350, %v348
    %v352 = vpop.permute.xlu0 %351
    %v354 = vmul.f32 %v345, %v352
    %355 = vset.pattern.permute.xlu0 3
    %356 = vperm.xlu0 %355, %v274
    %v357 = vpop.permute.xlu0 %356
    %v359 = vperm.slane %v293, 1
    %v360 = vadd.f32 %v357, %v359
    %vm361 = vcmp.gt.f32.partialorder %v360, 0.0
    %v362 = vmul.f32 %v360, 0.2
    %v363 = vsel %vm361, %v360, %v362
    %v364 = vadd.f32 %v363, %v34
    %v365 = vsel %vm153, %v364, -inf
    %366 = vmax.xlane.f32.xlu0 %v365
    %v367 = vpop.xlane.xlu0 %366
    %v368 = vsub.f32 %v364, %v367
    %v369 = vmul.f32 %v368, 1.442695
    %v370 = vpow.pop %v369
    %v371 = vpack.c.bf16 %v370, %v370
    %v373 = vsel %vm153, %v371, 0
    %375 = vmatpush.bf16.msra.mxu0 0
    %376 = vmatpush.bf16.msra.mxu0 0
    %377 = vmatpush.bf16.msra.mxu0 0
    %378 = vmatpush.bf16.msra.mxu0 0
    %379 = vmatpush.bf16.msra.mxu0 0
    %380 = vmatpush.bf16.msra.mxu0 0
    %381 = vmatpush.bf16.msra.mxu0 0
    %382 = vmatpush.bf16.msra.mxu0 %v333
    %383 = vmatmul.bf16.gmra.mxu0 %v373
    %v384 = vpop.f32.mrf.mxu0
    %v385 = vadd.f32 0.0, %v384
    %v386 = vpop.f32.mrf.mxu0
    %387 = vdwg.mxu0
    %v388 = vrcp.pop %v385
    %390 = vset.pattern.permute.xlu0 64
    %391 = vperm.xlu0 %390, %v388
    %v392 = vpop.permute.xlu0 %391
    %v394 = vmul.f32 %v385, %v392
    %v395 = vsel %vm228, %v354, %v394
    %v396 = vperm.slane %v61, 0
    %v397 = vadd.f32 %v395, %v396
    %vm398 = vcmp.gt.f32.partialorder %v397, 0.0
    %v399 = vmul.f32 %v397, 0.01
    %v400 = vsel %vm398, %v397, %v399
    %v401 = vld [vmem:[#allocation2 + $0xd8] sm:$0xff]
    %v402 = vld [vmem:[#allocation2 + $0xe0] sm:$0xff]
    %v403 = vld [vmem:[#allocation2 + $0xe8] sm:$0xff]
    %v404 = vld [vmem:[#allocation2 + $0xf0] sm:$0xff]
    %v405 = vld [vmem:[#allocation2 + $0xf8] sm:$0xff]
    %v406 = vld [vmem:[#allocation2 + $0x100] sm:$0xff]
    %v407 = vld [vmem:[#allocation2 + $0x108] sm:$0xff]
    %v408 = vld [vmem:[#allocation2 + $0x110] sm:$0xff]
    %v409 = vld [vmem:[#allocation2 + $0x118] sm:$0xff]
    %v410 = vld [vmem:[#allocation2 + $0x120] sm:$0xff]
    %v411 = vld [vmem:[#allocation2 + $0x128] sm:$0xff]
    %v412 = vld [vmem:[#allocation2 + $0x130] sm:$0xff]
    %v413 = vld [vmem:[#allocation2 + $0x138] sm:$0x1]
    %v414 = vpack.c.bf16 %v400, %v400
    %v415 = vpack.c.bf16 %v402, %v401
    %v416 = vpack.c.bf16 %v404, %v403
    %v417 = vpack.c.bf16 %v406, %v405
    %v418 = vpack.c.bf16 %v408, %v407
    %v419 = vperm.slane %v413, 0
    %v421 = vsel %vm91, %v414, 0
    %423 = vmatpush.bf16.msra.mxu0 0
    %424 = vmatpush.bf16.msra.mxu0 0
    %425 = vmatpush.bf16.msra.mxu0 0
    %426 = vmatpush.bf16.msra.mxu0 0
    %427 = vmatpush.bf16.msra.mxu0 %v418
    %428 = vmatpush.bf16.msra.mxu0 %v417
    %429 = vmatpush.bf16.msra.mxu0 %v416
    %430 = vmatpush.bf16.msra.mxu0 %v415
    %431 = vmatmul.bf16.gmra.mxu0 %v421
    %v432 = vpop.f32.mrf.mxu0
    %v433 = vadd.f32 %v419, %v432
    %v434 = vpop.f32.mrf.mxu0
    %435 = vdwg.mxu0
    %v437 = vsel %vm228, 0.0, 0
    %439 = vmatpush.msra.mxu0 0.0
    %440 = vmatpush.msra.mxu0 0.0
    %441 = vmatpush.msra.mxu0 0.0
    %442 = vmatpush.msra.mxu0 0.0
    %443 = vmatpush.msra.mxu0 0.0
    %444 = vmatpush.msra.mxu0 0.0
    %445 = vmatpush.msra.mxu0 0.0
    %446 = vmatpush.msra.mxu0 0.0
    %447 = vmatpush.msra.mxu0 0.0
    %448 = vmatpush.msra.mxu0 0.0
    %449 = vmatpush.msra.mxu0 0.0
    %450 = vmatpush.msra.mxu0 0.0
    %451 = vmatpush.msra.mxu0 %v412
    %452 = vmatpush.msra.mxu0 %v411
    %453 = vmatpush.msra.mxu0 %v410
    %454 = vmatpush.msra.mxu0 %v409
    %455 = vmatmul.f32.gmra.mxu0 %v437
    %v456 = vpop.f32.mrf.mxu0
    %v457 = vadd.f32 0.0, %v456
    %458 = vdwg.mxu0
    %v459 = vadd.f32 %v433, %v457
    %v460 = vxor.u32 %v459, 2147483648
    %v461 = vmul.f32 %v460, 1.442695
    %v462 = vpow.pop %v461
    %v463 = vadd.f32 %v462, 1.0
    %v464 = vrcp.pop %v463
    %v465 = vmul.f32 %v463, %v464
    %v466 = vsub.f32 1.0, %v465
    %v467 = vmul.f32 %v464, %v466
    %v468 = vadd.f32 %v464, %v467
    %vm469 = vweird.f32 %v463
    %vm470 = vweird.f32 %v464
    %vm471 = vmor %vm469, %vm470
    %v472 = vsel %vm471, %v464, %v468
    %v473 = vand.u32 2147483647, %v463
    %vm474 = vcmp.eq.f32.partialorder %v473, 8.507059e+37
    %v475 = vand.u32 %v463, 2147483648
    %v476 = vor.u32 1.1754944e-38, %v475
    %v477 = vsel %vm474, %v476, %v472
    %v478 = vmul.f32 1.0, %v477
    %v479 = vtanh.pop %v459
    %v480 = vmul.f32 %v478, 0.0
    %482 = vrot.lane.b32.xlu0 %v479, 64
    %v483 = vpop.permute.xlu0 %482
    %v485 = vmul.f32 %v478, %v483
    %487 = vrot.lane.b32.xlu0 %v485, 32
    %v488 = vpop.permute.xlu0 %487
    %v490 = vadd.f32 %v480, %v488
    %v491 = vtanh.pop %v490
    %493 = vrot.lane.b32.xlu0 %v491, 64
    %v494 = vpop.permute.xlu0 %493
    %v496 = vmul.f32 %v478, %v494
    %498 = vrot.lane.b32.xlu0 %v496, 32
    %v499 = vpop.permute.xlu0 %498
    %v500 = vsel %vm228, %v499, 0
    %502 = vmatpush.msra.mxu0 0.0
    %503 = vmatpush.msra.mxu0 0.0
    %504 = vmatpush.msra.mxu0 0.0
    %505 = vmatpush.msra.mxu0 0.0
    %506 = vmatpush.msra.mxu0 0.0
    %507 = vmatpush.msra.mxu0 0.0
    %508 = vmatpush.msra.mxu0 0.0
    %509 = vmatpush.msra.mxu0 0.0
    %510 = vmatpush.msra.mxu0 0.0
    %511 = vmatpush.msra.mxu0 0.0
    %512 = vmatpush.msra.mxu0 0.0
    %513 = vmatpush.msra.mxu0 0.0
    %514 = vmatpush.msra.mxu0 %v412
    %515 = vmatpush.msra.mxu0 %v411
    %516 = vmatpush.msra.mxu0 %v410
    %517 = vmatpush.msra.mxu0 %v409
    %518 = vmatmul.f32.gmra.mxu0 %v500
    %v519 = vpop.f32.mrf.mxu0
    %v520 = vadd.f32 0.0, %v519
    %521 = vdwg.mxu0
    %v523 = vrot.slane %v520, 7
    %v525 = vadd.f32 %v433, %v523
    %v526 = vxor.u32 %v525, 2147483648
    %v527 = vmul.f32 %v526, 1.442695
    %v528 = vpow.pop %v527
    %v529 = vadd.f32 %v528, 1.0
    %v530 = vrcp.pop %v529
    %v531 = vmul.f32 %v529, %v530
    %v532 = vsub.f32 1.0, %v531
    %v533 = vmul.f32 %v530, %v532
    %v534 = vadd.f32 %v530, %v533
    %vm535 = vweird.f32 %v529
    %vm536 = vweird.f32 %v530
    %vm537 = vmor %vm535, %vm536
    %v538 = vsel %vm537, %v530, %v534
    %v539 = vand.u32 2147483647, %v529
    %vm540 = vcmp.eq.f32.partialorder %v539, 8.507059e+37
    %v541 = vand.u32 %v529, 2147483648
    %v542 = vor.u32 1.1754944e-38, %v541
    %v543 = vsel %vm540, %v542, %v538
    %v544 = vmul.f32 1.0, %v543
    %v545 = vtanh.pop %v525
    %v547 = vrot.slane %v490, 7
    %v549 = vmul.f32 %v544, %v547
    %551 = vrot.lane.b32.xlu0 %v545, 64
    %v552 = vpop.permute.xlu0 %551
    %v554 = vmul.f32 %v544, %v552
    %556 = vrot.lane.b32.xlu0 %v554, 32
    %v557 = vpop.permute.xlu0 %556
    %v559 = vadd.f32 %v549, %v557
    %v560 = vtanh.pop %v559
    %562 = vrot.lane.b32.xlu0 %v560, 64
    %v563 = vpop.permute.xlu0 %562
    %v565 = vmul.f32 %v544, %v563
    %v567 = vrot.slane %v565, 1
    %568 = vrot.lane.b32.xlu0 %v567, 32
    %v569 = vpop.permute.xlu0 %568
    %v570 = vsel %vm228, %v569, 0
    %572 = vmatpush.msra.mxu0 0.0
    %573 = vmatpush.msra.mxu0 0.0
    %574 = vmatpush.msra.mxu0 0.0
    %575 = vmatpush.msra.mxu0 0.0
    %576 = vmatpush.msra.mxu0 0.0
    %577 = vmatpush.msra.mxu0 0.0
    %578 = vmatpush.msra.mxu0 0.0
    %579 = vmatpush.msra.mxu0 0.0
    %580 = vmatpush.msra.mxu0 0.0
    %581 = vmatpush.msra.mxu0 0.0
    %582 = vmatpush.msra.mxu0 0.0
    %583 = vmatpush.msra.mxu0 0.0
    %584 = vmatpush.msra.mxu0 %v412
    %585 = vmatpush.msra.mxu0 %v411
    %586 = vmatpush.msra.mxu0 %v410
    %587 = vmatpush.msra.mxu0 %v409
    %588 = vmatmul.f32.gmra.mxu0 %v570
    %v589 = vpop.f32.mrf.mxu0
    %v590 = vadd.f32 0.0, %v589
    %591 = vdwg.mxu0
    %v593 = vrot.slane %v590, 6
    %v595 = vadd.f32 %v433, %v593
    %v596 = vxor.u32 %v595, 2147483648
    %v597 = vmul.f32 %v596, 1.442695
    %v598 = vpow.pop %v597
    %v599 = vadd.f32 %v598, 1.0
    %v600 = vrcp.pop %v599
    %v601 = vmul.f32 %v599, %v600
    %v602 = vsub.f32 1.0, %v601
    %v603 = vmul.f32 %v600, %v602
    %v604 = vadd.f32 %v600, %v603
    %vm605 = vweird.f32 %v599
    %vm606 = vweird.f32 %v600
    %vm607 = vmor %vm605, %vm606
    %v608 = vsel %vm607, %v600, %v604
    %v609 = vand.u32 2147483647, %v599
    %vm610 = vcmp.eq.f32.partialorder %v609, 8.507059e+37
    %v611 = vand.u32 %v599, 2147483648
    %v612 = vor.u32 1.1754944e-38, %v611
    %v613 = vsel %vm610, %v612, %v608
    %v614 = vmul.f32 1.0, %v613
    %v615 = vtanh.pop %v595
    %v617 = vrot.slane %v559, 7
    %v619 = vmul.f32 %v614, %v617
    %621 = vrot.lane.b32.xlu0 %v615, 64
    %v622 = vpop.permute.xlu0 %621
    %v624 = vmul.f32 %v614, %v622
    %626 = vrot.lane.b32.xlu0 %v624, 32
    %v627 = vpop.permute.xlu0 %626
    %v629 = vadd.f32 %v619, %v627
    %v630 = vtanh.pop %v629
    %632 = vrot.lane.b32.xlu0 %v630, 64
    %v633 = vpop.permute.xlu0 %632
    %v635 = vmul.f32 %v614, %v633
    %v637 = vrot.slane %v635, 2
    %638 = vrot.lane.b32.xlu0 %v637, 32
    %v639 = vpop.permute.xlu0 %638
    %v640 = vsel %vm228, %v639, 0
    %642 = vmatpush.msra.mxu0 0.0
    %643 = vmatpush.msra.mxu0 0.0
    %644 = vmatpush.msra.mxu0 0.0
    %645 = vmatpush.msra.mxu0 0.0
    %646 = vmatpush.msra.mxu0 0.0
    %647 = vmatpush.msra.mxu0 0.0
    %648 = vmatpush.msra.mxu0 0.0
    %649 = vmatpush.msra.mxu0 0.0
    %650 = vmatpush.msra.mxu0 0.0
    %651 = vmatpush.msra.mxu0 0.0
    %652 = vmatpush.msra.mxu0 0.0
    %653 = vmatpush.msra.mxu0 0.0
    %654 = vmatpush.msra.mxu0 %v412
    %655 = vmatpush.msra.mxu0 %v411
    %656 = vmatpush.msra.mxu0 %v410
    %657 = vmatpush.msra.mxu0 %v409
    %658 = vmatmul.f32.gmra.mxu0 %v640
    %v659 = vpop.f32.mrf.mxu0
    %v660 = vadd.f32 0.0, %v659
    %661 = vdwg.mxu0
    %v663 = vrot.slane %v660, 5
    %v665 = vadd.f32 %v433, %v663
    %v666 = vxor.u32 %v665, 2147483648
    %v667 = vmul.f32 %v666, 1.442695
    %v668 = vpow.pop %v667
    %v669 = vadd.f32 %v668, 1.0
    %v670 = vrcp.pop %v669
    %v671 = vmul.f32 %v669, %v670
    %v672 = vsub.f32 1.0, %v671
    %v673 = vmul.f32 %v670, %v672
    %v674 = vadd.f32 %v670, %v673
    %vm675 = vweird.f32 %v669
    %vm676 = vweird.f32 %v670
    %vm677 = vmor %vm675, %vm676
    %v678 = vsel %vm677, %v670, %v674
    %v679 = vand.u32 2147483647, %v669
    %vm680 = vcmp.eq.f32.partialorder %v679, 8.507059e+37
    %v681 = vand.u32 %v669, 2147483648
    %v682 = vor.u32 1.1754944e-38, %v681
    %v683 = vsel %vm680, %v682, %v678
    %v684 = vmul.f32 1.0, %v683
    %v685 = vtanh.pop %v665
    %v687 = vrot.slane %v629, 7
    %v689 = vmul.f32 %v684, %v687
    %691 = vrot.lane.b32.xlu0 %v685, 64
    %v692 = vpop.permute.xlu0 %691
    %v694 = vmul.f32 %v684, %v692
    %696 = vrot.lane.b32.xlu0 %v694, 32
    %v697 = vpop.permute.xlu0 %696
    %v699 = vadd.f32 %v689, %v697
    %v700 = vtanh.pop %v699
    %702 = vrot.lane.b32.xlu0 %v700, 64
    %v703 = vpop.permute.xlu0 %702
    %v705 = vmul.f32 %v684, %v703
    %v707 = vrot.slane %v705, 3
    %708 = vrot.lane.b32.xlu0 %v707, 32
    %v709 = vpop.permute.xlu0 %708
    %v710 = vsel %vm228, %v709, 0
    %712 = vmatpush.msra.mxu0 0.0
    %713 = vmatpush.msra.mxu0 0.0
    %714 = vmatpush.msra.mxu0 0.0
    %715 = vmatpush.msra.mxu0 0.0
    %716 = vmatpush.msra.mxu0 0.0
    %717 = vmatpush.msra.mxu0 0.0
    %718 = vmatpush.msra.mxu0 0.0
    %719 = vmatpush.msra.mxu0 0.0
    %720 = vmatpush.msra.mxu0 0.0
    %721 = vmatpush.msra.mxu0 0.0
    %722 = vmatpush.msra.mxu0 0.0
    %723 = vmatpush.msra.mxu0 0.0
    %724 = vmatpush.msra.mxu0 %v412
    %725 = vmatpush.msra.mxu0 %v411
    %726 = vmatpush.msra.mxu0 %v410
    %727 = vmatpush.msra.mxu0 %v409
    %728 = vmatmul.f32.gmra.mxu0 %v710
    %v729 = vpop.f32.mrf.mxu0
    %v730 = vadd.f32 0.0, %v729
    %731 = vdwg.mxu0
    %v733 = vrot.slane %v730, 4
    %v735 = vadd.f32 %v433, %v733
    %v736 = vxor.u32 %v735, 2147483648
    %v737 = vmul.f32 %v736, 1.442695
    %v738 = vpow.pop %v737
    %v739 = vadd.f32 %v738, 1.0
    %v740 = vrcp.pop %v739
    %v741 = vmul.f32 %v739, %v740
    %v742 = vsub.f32 1.0, %v741
    %v743 = vmul.f32 %v740, %v742
    %v744 = vadd.f32 %v740, %v743
    %vm745 = vweird.f32 %v739
    %vm746 = vweird.f32 %v740
    %vm747 = vmor %vm745, %vm746
    %v748 = vsel %vm747, %v740, %v744
    %v749 = vand.u32 2147483647, %v739
    %vm750 = vcmp.eq.f32.partialorder %v749, 8.507059e+37
    %v751 = vand.u32 %v739, 2147483648
    %v752 = vor.u32 1.1754944e-38, %v751
    %v753 = vsel %vm750, %v752, %v748
    %v754 = vmul.f32 1.0, %v753
    %v755 = vtanh.pop %v735
    %v757 = vrot.slane %v699, 7
    %v759 = vmul.f32 %v754, %v757
    %761 = vrot.lane.b32.xlu0 %v755, 64
    %v762 = vpop.permute.xlu0 %761
    %v764 = vmul.f32 %v754, %v762
    %766 = vrot.lane.b32.xlu0 %v764, 32
    %v767 = vpop.permute.xlu0 %766
    %v769 = vadd.f32 %v759, %v767
    %v770 = vtanh.pop %v769
    %772 = vrot.lane.b32.xlu0 %v770, 64
    %v773 = vpop.permute.xlu0 %772
    %v775 = vmul.f32 %v754, %v773
    %v777 = vrot.slane %v775, 4
    %778 = vrot.lane.b32.xlu0 %v777, 32
    %v779 = vpop.permute.xlu0 %778
    %v780 = vsel %vm228, %v779, 0
    %782 = vmatpush.msra.mxu0 0.0
    %783 = vmatpush.msra.mxu0 0.0
    %784 = vmatpush.msra.mxu0 0.0
    %785 = vmatpush.msra.mxu0 0.0
    %786 = vmatpush.msra.mxu0 0.0
    %787 = vmatpush.msra.mxu0 0.0
    %788 = vmatpush.msra.mxu0 0.0
    %789 = vmatpush.msra.mxu0 0.0
    %790 = vmatpush.msra.mxu0 0.0
    %791 = vmatpush.msra.mxu0 0.0
    %792 = vmatpush.msra.mxu0 0.0
    %793 = vmatpush.msra.mxu0 0.0
    %794 = vmatpush.msra.mxu0 %v412
    %795 = vmatpush.msra.mxu0 %v411
    %796 = vmatpush.msra.mxu0 %v410
    %797 = vmatpush.msra.mxu0 %v409
    %798 = vmatmul.f32.gmra.mxu0 %v780
    %v799 = vpop.f32.mrf.mxu0
    %v800 = vadd.f32 0.0, %v799
    %801 = vdwg.mxu0
    %v803 = vrot.slane %v800, 3
    %v805 = vadd.f32 %v433, %v803
    %v806 = vxor.u32 %v805, 2147483648
    %v807 = vmul.f32 %v806, 1.442695
    %v808 = vpow.pop %v807
    %v809 = vadd.f32 %v808, 1.0
    %v810 = vrcp.pop %v809
    %v811 = vmul.f32 %v809, %v810
    %v812 = vsub.f32 1.0, %v811
    %v813 = vmul.f32 %v810, %v812
    %v814 = vadd.f32 %v810, %v813
    %vm815 = vweird.f32 %v809
    %vm816 = vweird.f32 %v810
    %vm817 = vmor %vm815, %vm816
    %v818 = vsel %vm817, %v810, %v814
    %v819 = vand.u32 2147483647, %v809
    %vm820 = vcmp.eq.f32.partialorder %v819, 8.507059e+37
    %v821 = vand.u32 %v809, 2147483648
    %v822 = vor.u32 1.1754944e-38, %v821
    %v823 = vsel %vm820, %v822, %v818
    %v824 = vmul.f32 1.0, %v823
    %v825 = vtanh.pop %v805
    %v827 = vrot.slane %v769, 7
    %v829 = vmul.f32 %v824, %v827
    %831 = vrot.lane.b32.xlu0 %v825, 64
    %v832 = vpop.permute.xlu0 %831
    %v834 = vmul.f32 %v824, %v832
    %836 = vrot.lane.b32.xlu0 %v834, 32
    %v837 = vpop.permute.xlu0 %836
    %v839 = vadd.f32 %v829, %v837
    %v840 = vtanh.pop %v839
    %842 = vrot.lane.b32.xlu0 %v840, 64
    %v843 = vpop.permute.xlu0 %842
    %v845 = vmul.f32 %v824, %v843
    %v847 = vrot.slane %v845, 5
    %848 = vrot.lane.b32.xlu0 %v847, 32
    %v849 = vpop.permute.xlu0 %848
    %v850 = vsel %vm228, %v849, 0
    %852 = vmatpush.msra.mxu0 0.0
    %853 = vmatpush.msra.mxu0 0.0
    %854 = vmatpush.msra.mxu0 0.0
    %855 = vmatpush.msra.mxu0 0.0
    %856 = vmatpush.msra.mxu0 0.0
    %857 = vmatpush.msra.mxu0 0.0
    %858 = vmatpush.msra.mxu0 0.0
    %859 = vmatpush.msra.mxu0 0.0
    %860 = vmatpush.msra.mxu0 0.0
    %861 = vmatpush.msra.mxu0 0.0
    %862 = vmatpush.msra.mxu0 0.0
    %863 = vmatpush.msra.mxu0 0.0
    %864 = vmatpush.msra.mxu0 %v412
    %865 = vmatpush.msra.mxu0 %v411
    %866 = vmatpush.msra.mxu0 %v410
    %867 = vmatpush.msra.mxu0 %v409
    %868 = vmatmul.f32.gmra.mxu0 %v850
    %v869 = vpop.f32.mrf.mxu0
    %v870 = vadd.f32 0.0, %v869
    %871 = vdwg.mxu0
    %v873 = vrot.slane %v870, 2
    %v875 = vadd.f32 %v433, %v873
    %v876 = vxor.u32 %v875, 2147483648
    %v877 = vmul.f32 %v876, 1.442695
    %v878 = vpow.pop %v877
    %v879 = vadd.f32 %v878, 1.0
    %v880 = vrcp.pop %v879
    %v881 = vmul.f32 %v879, %v880
    %v882 = vsub.f32 1.0, %v881
    %v883 = vmul.f32 %v880, %v882
    %v884 = vadd.f32 %v880, %v883
    %vm885 = vweird.f32 %v879
    %vm886 = vweird.f32 %v880
    %vm887 = vmor %vm885, %vm886
    %v888 = vsel %vm887, %v880, %v884
    %v889 = vand.u32 2147483647, %v879
    %vm890 = vcmp.eq.f32.partialorder %v889, 8.507059e+37
    %v891 = vand.u32 %v879, 2147483648
    %v892 = vor.u32 1.1754944e-38, %v891
    %v893 = vsel %vm890, %v892, %v888
    %v894 = vmul.f32 1.0, %v893
    %v895 = vtanh.pop %v875
    %v897 = vrot.slane %v839, 7
    %v899 = vmul.f32 %v894, %v897
    %901 = vrot.lane.b32.xlu0 %v895, 64
    %v902 = vpop.permute.xlu0 %901
    %v904 = vmul.f32 %v894, %v902
    %906 = vrot.lane.b32.xlu0 %v904, 32
    %v907 = vpop.permute.xlu0 %906
    %v909 = vadd.f32 %v899, %v907
    %v910 = vtanh.pop %v909
    %912 = vrot.lane.b32.xlu0 %v910, 64
    %v913 = vpop.permute.xlu0 %912
    %v915 = vmul.f32 %v894, %v913
    %v917 = vrot.slane %v915, 6
    %918 = vrot.lane.b32.xlu0 %v917, 32
    %v919 = vpop.permute.xlu0 %918
    %v920 = vsel %vm228, %v919, 0
    %922 = vmatpush.msra.mxu0 0.0
    %923 = vmatpush.msra.mxu0 0.0
    %924 = vmatpush.msra.mxu0 0.0
    %925 = vmatpush.msra.mxu0 0.0
    %926 = vmatpush.msra.mxu0 0.0
    %927 = vmatpush.msra.mxu0 0.0
    %928 = vmatpush.msra.mxu0 0.0
    %929 = vmatpush.msra.mxu0 0.0
    %930 = vmatpush.msra.mxu0 0.0
    %931 = vmatpush.msra.mxu0 0.0
    %932 = vmatpush.msra.mxu0 0.0
    %933 = vmatpush.msra.mxu0 0.0
    %934 = vmatpush.msra.mxu0 %v412
    %935 = vmatpush.msra.mxu0 %v411
    %936 = vmatpush.msra.mxu0 %v410
    %937 = vmatpush.msra.mxu0 %v409
    %938 = vmatmul.f32.gmra.mxu0 %v920
    %v939 = vpop.f32.mrf.mxu0
    %v940 = vadd.f32 0.0, %v939
    %941 = vdwg.mxu0
    %v943 = vrot.slane %v940, 1
    %v945 = vadd.f32 %v433, %v943
    %v946 = vxor.u32 %v945, 2147483648
    %v947 = vmul.f32 %v946, 1.442695
    %v948 = vpow.pop %v947
    %v949 = vadd.f32 %v948, 1.0
    %v950 = vrcp.pop %v949
    %v951 = vmul.f32 %v949, %v950
    %v952 = vsub.f32 1.0, %v951
    %v953 = vmul.f32 %v950, %v952
    %v954 = vadd.f32 %v950, %v953
    %vm955 = vweird.f32 %v949
    %vm956 = vweird.f32 %v950
    %vm957 = vmor %vm955, %vm956
    %v958 = vsel %vm957, %v950, %v954
    %v959 = vand.u32 2147483647, %v949
    %vm960 = vcmp.eq.f32.partialorder %v959, 8.507059e+37
    %v961 = vand.u32 %v949, 2147483648
    %v962 = vor.u32 1.1754944e-38, %v961
    %v963 = vsel %vm960, %v962, %v958
    %v964 = vmul.f32 1.0, %v963
    %v965 = vtanh.pop %v945
    %v967 = vrot.slane %v909, 7
    %v969 = vmul.f32 %v964, %v967
    %971 = vrot.lane.b32.xlu0 %v965, 64
    %v972 = vpop.permute.xlu0 %971
    %v974 = vmul.f32 %v964, %v972
    %976 = vrot.lane.b32.xlu0 %v974, 32
    %v977 = vpop.permute.xlu0 %976
    %v979 = vadd.f32 %v969, %v977
    %v980 = vtanh.pop %v979
    %982 = vrot.lane.b32.xlu0 %v980, 64
    %v983 = vpop.permute.xlu0 %982
    %v985 = vmul.f32 %v964, %v983
    %v986 = vld [vmem:[#allocation2 + $0x140] sm:$0x1]
    %v987 = vld [vmem:[#allocation2 + $0x141] sm:$0x1]
    %v989 = vrot.slane %v986, 1
    %990 = vrot.lane.b32.xlu0 %v989, 96
    %v991 = vpop.permute.xlu0 %990
    %v993 = vmul.f32 %v985, %v991
    %995 = vrot.lane.b32.xlu0 %v993, 32
    %v996 = vpop.permute.xlu0 %995
    %vm998 = vcmask 261127
    %v999 = vsel %vm998, %v996, 0.0
    %1000 = vadd.xlane.f32.xlu0 %v999
    %v1001 = vpop.xlane.xlu0 %1000
    %v1003 = vrot.slane %v987, 1
    %v1005 = vadd.f32 %v1001, %v1003
    %vm1006 = vcmask 7175
    %1007 = vst.msk [vmem:[#allocation5 - $0x7] sm:$0x80] %vm1006, %v1005
    // Predicated region
    $region18: #{tpu_custom_call.1} parent=1 // pred_check
      _
    $region19: #{tpu_custom_call.1} parent=1 // pred_check_branch
      %1009 = sbr.rel (0) target = $region21
    $region20: #{tpu_custom_call.1} parent=1 // pred_region
      %1011 = vsyncadd [#allocation4], 0
      %s1013 = sshll.u32 [#allocation5], 4
      %s1014 = int_to_ptr.vmem [resolvable:$true] %s1013
      %s1015 = sshll.u32 %s3, 4
      %s1016 = int_to_ptr.hbm [resolvable:$true] %s1015
      %1018 = dma.vmem_to_hbm [thread:$0]  %s1014, 16, %s1016, [#allocation4]
    $region21: #{tpu_custom_call.1} parent=1 // pred_fallthru
      _
    // Predicated region
    $region22: #{tpu_custom_call.1} parent=1 // pred_check
      _
    $region23: #{tpu_custom_call.1} parent=1 // pred_check_branch
      %1020 = sbr.rel (0) target = $region25
    $region24: #{tpu_custom_call.1} parent=1 // pred_region
      %1022 = dma.done [#allocation4], 16
    $region25: #{tpu_custom_call.1} parent=1 // pred_fallthru
      _
    %1023 = vsyncpa [#allocation3], 1
    %1024 = vsyncpa [#allocation4], 1

</llo_original>
